<compile_context>
chip_gen: v5e
topology: v5e:2x2
jax: 0.10.0
libtpu: 0.0.40
codegen_flags: <defaults>
</compile_context>

<pallas_src>
import functools
import math

import jax
import jax.numpy as jnp
from jax.experimental import pallas as pl
from jax.experimental.pallas import tpu as pltpu

LANE = 128  # TPU vreg lane width; channel dims are padded to a multiple of it.


def _rup(n, m=LANE):
    return ((n + m - 1) // m) * m


def _vmem_limit_bytes():
    """Generation-aware scoped-VMEM limit (leave ~25% headroom for Mosaic)."""
    cap = 64 * 1024 * 1024
    try:
        cap = int(getattr(pltpu.get_tpu_info(), "vmem_capacity_bytes", cap))
    except Exception:  # pragma: no cover - query unsupported on some builds
        pass
    return int(max(32 * 1024 * 1024, min(cap * 3 // 4, 100 * 1024 * 1024)))


# ----------------------------- fused Pallas kernel --------------------------

def _fused_time_block_kernel(*refs, time_nums, k, cdtype):
    """refs = (x, pe, tok_w, [conv_w_i, conv_b_i]*time_nums, proj_w, proj_b, out)."""
    x_ref, pe_ref, tok_w_ref = refs[0], refs[1], refs[2]
    blk_refs = refs[3:-3]
    proj_w_ref, proj_b_ref, o_ref = refs[-3], refs[-2], refs[-1]
    Bt, L = o_ref.shape[0], o_ref.shape[1]

    def conv_same(x, w_flat, kk, circular):
        # x: (Bt, L, Cin_p) compute dtype; w_flat: (kk*Cin_p, Cout_p) im2col wt.
        if kk == 1:
            xcat = x
        else:
            p = kk // 2
            c = x.shape[-1]
            if circular:                      # TokenEmbedding circular padding
                top = x[:, L - p:, :]
                bot = x[:, :kk - 1 - p, :]
            else:                             # ConvBlock zero "same" padding
                top = jnp.zeros((Bt, p, c), x.dtype)
                bot = jnp.zeros((Bt, kk - 1 - p, c), x.dtype)
            xp = jnp.concatenate([top, x, bot], axis=1)       # (Bt, L+kk-1, C)
            # im2col: lane-axis concat of the kk row-shifted views -> 1 matmul.
            xcat = jnp.concatenate([xp[:, t:t + L, :] for t in range(kk)],
                                   axis=-1)
        # Batch-packed matmul: M = Bt*L (>= 128 for short sequences).
        out = jnp.dot(xcat.reshape(Bt * L, xcat.shape[-1]), w_flat,
                      preferred_element_type=jnp.float32)
        return out.reshape(Bt, L, -1)

    # DataEmbedding: TokenEmbedding (Conv1d k=3, circular pad, no bias) + PE.
    x = x_ref[...].astype(cdtype)
    dec = conv_same(x, tok_w_ref[...], 3, True) + pe_ref[...]
    # TODO(synk): Dropout has no eval-mode effect; omitted (identity).

    # ConvBlock stack: grouped conv (BN folded into w/b) + ELU, f32 epilogue.
    for i in range(time_nums):
        w_ref, b_ref = blk_refs[2 * i], blk_refs[2 * i + 1]
        acc = conv_same(dec.astype(cdtype), w_ref[...], k, False) + b_ref[...]
        # ELU(alpha=1); exp(min(acc,0))-1 (expm1 lowering avoided for safety;
        # the f32 absolute error near 0 is negligible for this model).
        dec = jnp.where(acc > 0.0, acc, jnp.exp(jnp.minimum(acc, 0.0)) - 1.0)

    # pos_time: pointwise grouped projection to c_out (no norm / activation).
    out = conv_same(dec.astype(cdtype), proj_w_ref[...], 1, False) + proj_b_ref[...]
    o_ref[...] = out.astype(o_ref.dtype)


# ----------------------------- wrapper ---------------------------------------

def time_block_pallas(x, kparams, *, kernel, time_nums, c_out,
                      batch_tile=None, trim_output=True):
    """x: (B, L, enc_in) channel-last.  Returns (B, L, c_out) float32.

    kparams must come from pad_and_pack(); its dtype sets the compute dtype.
    """
    B, L, enc_in = x.shape
    cdtype = kparams["tok_w"].dtype                # compute dtype (bf16 default)
    cpx = kparams["tok_w"].shape[0] // 3           # padded input channels
    cpo = kparams["proj_w"].shape[1]               # padded output channels

    # Batch packing: aim for an MXU M-dim of Bt*L >= 128 per grid step.
    if batch_tile is None:
        batch_tile = max(1, min(B, -(-LANE // L)))
    Bt = batch_tile
    Bp = -(-B // Bt) * Bt
    # Single wrapper-side pad+cast of the runtime input (batch pad to a Bt
    # multiple + channel pad to the 128-lane slab); all other padding is done
    # inside the kernel.
    xp = jnp.pad(x.astype(cdtype), ((0, Bp - B), (0, 0), (0, cpx - enc_in)))

    inputs = [xp, kparams["pe"], kparams["tok_w"]]
    for i in range(time_nums):
        inputs += [kparams["conv_w"][i], kparams["conv_b"][i]]
    inputs += [kparams["proj_w"], kparams["proj_b"]]

    def _build_specs(single_buffer_weights):
        wkw = ({"pipeline_mode": pl.Buffered(1)} if single_buffer_weights
               else {})
        specs = [pl.BlockSpec((Bt, L, cpx), lambda b: (b, 0, 0))]
        for a in inputs[1:]:                       # grid-invariant params
            specs.append(pl.BlockSpec(a.shape, lambda b: (0, 0), **wkw))
        return specs

    # Advisory cost estimate with the true per-layer widths / dtypes.
    w_mats = [kparams["tok_w"]] + list(kparams["conv_w"]) + [kparams["proj_w"]]
    flops = int(2 * Bp * L * sum(w.shape[0] * w.shape[1] for w in w_mats))
    transcendentals = int(Bp * L * sum(w.shape[1] for w in kparams["conv_w"]))
    bytes_accessed = int(sum(a.size * a.dtype.itemsize for a in inputs)
                         + Bp * L * cpo * 4)

    def _call(single_buffer_weights):
        return pl.pallas_call(
            functools.partial(_fused_time_block_kernel, time_nums=time_nums,
                              k=kernel, cdtype=cdtype),
            out_shape=jax.ShapeDtypeStruct((Bp, L, cpo), jnp.float32),
            grid=(Bp // Bt,),
            in_specs=_build_specs(single_buffer_weights),
            out_specs=pl.BlockSpec((Bt, L, cpo), lambda b: (b, 0, 0)),
            compiler_params=pltpu.CompilerParams(
                dimension_semantics=("parallel",),   # v7x: 2 TCs split batch
                vmem_limit_bytes=_vmem_limit_bytes()),
            cost_estimate=pl.CostEstimate(flops=flops,
                                          transcendentals=transcendentals,
                                          bytes_accessed=bytes_accessed),
        )(*inputs)

    try:
        out = _call(True)        # single-buffered resident weights (1x VMEM)
    except Exception:
        # TODO(synk): pipeline_mode=pl.Buffered(1) rejected on this jax build;
        # fall back to default double-buffered weights (2x weight VMEM).
        out = _call(False)

    # TODO(synk): for very large L / d_model on v7x (64 MiB VMEM), add an
    # L-tiled grid axis (halo of k//2 rows) and stream the deepest-layer
    # weights from HBM instead of holding the full-L activation per step.
    out = out[:B]
    # Note: this slice is a full extra HBM pass of (B, L, cpo); fuse it into
    # the consumer (trim_output=False) when the padded slab is acceptable.
    return out[:, :, :c_out] if trim_output else out


# ----------------------------- parameter glue --------------------------------

def sinusoidal_pe(L, d_model):
    pos = jnp.arange(L, dtype=jnp.float32)[:, None]
    div = jnp.exp(jnp.arange(0, d_model, 2, dtype=jnp.float32)
                  * (-math.log(10000.0) / d_model))
    ang = pos * div
    pe = jnp.zeros((L, d_model), jnp.float32)
    pe = pe.at[:, 0::2].set(jnp.sin(ang))
    pe = pe.at[:, 1::2].set(jnp.cos(ang))
    return pe


def grouped_conv_weight(key, c_in, c_out, k, groups):
    """PyTorch-style Conv1d weight (c_out, c_in//g, k) densified to a
    block-diagonal (k, c_in, c_out) tensor.  Channels in this module are far
    below 128 per group, so dense is the right call here.
    TODO(synk): for c_in//g >= 128 switch to per-group matmuls instead of the
    dense block-diagonal to avoid group-times wasted MXU MACs and weight DMA."""
    cin_g, cout_g = c_in // groups, c_out // groups
    w_pt = jax.random.normal(key, (c_out, cin_g, k), jnp.float32) * 0.05
    dense = jnp.zeros((k, c_in, c_out), jnp.float32)
    for g in range(groups):
        blk = jnp.transpose(w_pt[g * cout_g:(g + 1) * cout_g], (2, 1, 0))
        dense = dense.at[:, g * cin_g:(g + 1) * cin_g,
                         g * cout_g:(g + 1) * cout_g].set(blk)
    return dense


def build_params(key, enc_in, d_model, kernel, time_nums, c_out, group, L):
    """Logical (unpadded) parameters; BatchNorm folded into conv w/b."""
    keys = jax.random.split(key, 3 + 2 * time_nums)
    bn_eps = 1e-5
    params = {"tok_w": grouped_conv_weight(keys[0], enc_in, d_model, 3, 1),
              "pe": sinusoidal_pe(L, d_model),
              "conv_w": [], "conv_b": []}
    ki = 1
    for i in range(time_nums):
        cin, cout = d_model * 2 ** i, d_model * 2 ** (i + 1)
        w = grouped_conv_weight(keys[ki], cin, cout, kernel, group)
        b = jax.random.normal(keys[ki + 1], (cout,), jnp.float32) * 0.05
        ki += 2
        # BatchNorm1d eval fold: y = (conv + b - mean)*gamma/sqrt(var+eps) + beta
        # (general formula; init running stats used here — real checkpoints
        #  must supply running mean/var/gamma/beta for a correct fold).
        gamma, beta = jnp.ones((cout,)), jnp.zeros((cout,))
        mean, var = jnp.zeros((cout,)), jnp.ones((cout,))
        s = gamma / jnp.sqrt(var + bn_eps)
        params["conv_w"].append(w * s[None, None, :])
        params["conv_b"].append((b - mean) * s + beta)
    c_last = d_model * 2 ** time_nums
    params["proj_w"] = grouped_conv_weight(keys[ki], c_last, c_out, 1, group)
    params["proj_b"] = jax.random.normal(keys[ki + 1], (c_out,),
                                         jnp.float32) * 0.05
    return params


def pad_and_pack(params, compute_dtype=jnp.bfloat16):
    """Zero-pad every channel dim to a multiple of 128 (lane-dense loads and
    unmasked stores), flatten conv weights to im2col (k*Cin_p, Cout_p), and
    pre-cast weight/PE slabs to the compute dtype ONCE (no per-call converts).
    Biases stay f32: they are added in the f32 epilogue and are tiny."""
    def pad_w(w):
        k, cin, cout = w.shape
        cpi, cpo = _rup(cin), _rup(cout)
        wp = jnp.zeros((k, cpi, cpo), jnp.float32).at[:, :cin, :cout].set(w)
        return wp.reshape(k * cpi, cpo).astype(compute_dtype)

    def pad_b(b):
        b = b.reshape(1, -1)
        return jnp.zeros((1, _rup(b.shape[1])),
                         jnp.float32).at[:, :b.shape[1]].set(b)

    pe = params["pe"]
    pep = jnp.zeros((pe.shape[0], _rup(pe.shape[1])),
                    jnp.float32).at[:, :pe.shape[1]].set(pe)
    return {"tok_w": pad_w(params["tok_w"]),
            "pe": pep.astype(compute_dtype),
            "conv_w": [pad_w(w) for w in params["conv_w"]],
            "conv_b": [pad_b(b) for b in params["conv_b"]],
            "proj_w": pad_w(params["proj_w"]),
            "proj_b": pad_b(params["proj_b"])}


# ----------------------------- pure-JAX reference ----------------------------

def _ref_conv1d(x, w, *, circular, bias=None):
    # x: (B, L, Cin) channel-last; w: (k, Cin, Cout) dense block-diagonal.
    k = w.shape[0]
    p = k // 2
    L = x.shape[1]
    if k == 1:
        xp = x
    elif circular:
        xp = jnp.concatenate([x[:, L - p:], x, x[:, :k - 1 - p]], axis=1)
    else:
        xp = jnp.pad(x, ((0, 0), (p, k - 1 - p), (0, 0)))
    out = sum(jnp.einsum("blc,cd->bld", xp[:, t:t + L], w[t],
                         precision="highest") for t in range(k))
    if bias is not None:
        out = out + bias
    return out


def time_block_reference(x, params, kernel, time_nums):
    dec = _ref_conv1d(x, params["tok_w"], circular=True) + params["pe"][None]
    for i in range(time_nums):
        a = _ref_conv1d(dec, params["conv_w"][i], circular=False,
                        bias=params["conv_b"][i])
        dec = jnp.where(a > 0.0, a, jnp.exp(jnp.minimum(a, 0.0)) - 1.0)
    return _ref_conv1d(dec, params["proj_w"], circular=False,
                       bias=params["proj_b"])


# ----------------------------- demo / self-check -----------------------------

if __name__ == "__main__":
    # module hyper-params
    enc_in, d_model, kernel, time_nums, c_out, group = 4, 8, 3, 2, 4, 2
    B, L = 2, 16

    key = jax.random.PRNGKey(0)
    kx, kp = jax.random.split(key)
    x = jax.random.normal(kx, (B, L, enc_in), jnp.float32)
    params = build_params(kp, enc_in, d_model, kernel, time_nums, c_out,
                          group, L)
    ref = time_block_reference(x, params, kernel, time_nums)

    # f32 path: tight numerics check against the pure-JAX reference.
    kparams_f32 = pad_and_pack(params, compute_dtype=jnp.float32)
    out_f32 = jax.block_until_ready(
        time_block_pallas(x, kparams_f32, kernel=kernel, time_nums=time_nums,
                          c_out=c_out))
    assert out_f32.shape == (B, L, c_out) and out_f32.dtype == jnp.float32
    err_f32 = float(jnp.max(jnp.abs(out_f32 - ref)))
    assert err_f32 < 5e-3, f"f32 kernel/reference mismatch: max|err|={err_f32}"

    # Default path: bf16 weights/activations, f32 MXU accumulate + epilogue
    # (all generations).  Looser tolerance for bf16 rounding.
    kparams_bf16 = pad_and_pack(params)
    out_bf16 = jax.block_until_ready(
        time_block_pallas(x, kparams_bf16, kernel=kernel, time_nums=time_nums,
                          c_out=c_out))
    assert out_bf16.shape == (B, L, c_out) and out_bf16.dtype == jnp.float32
    assert bool(jnp.all(jnp.isfinite(out_bf16)))
    err_bf16 = float(jnp.max(jnp.abs(out_bf16 - ref)))
    assert err_bf16 < 5e-2, f"bf16 kernel/reference mismatch: max|err|={err_bf16}"

    print("KERNEL_OK")
</pallas_src>

<mosaic_0001>
module attributes {stable_mosaic.version = 11 : i64} {
  func.func @_fused_time_block_kernel(%arg0: i32, %arg1: memref<2x16x128xf32, #tpu.memory_space<vmem>>, %arg2: memref<16x128xf32, #tpu.memory_space<vmem>>, %arg3: memref<384x128xf32, #tpu.memory_space<vmem>>, %arg4: memref<384x128xf32, #tpu.memory_space<vmem>>, %arg5: memref<1x128xf32, #tpu.memory_space<vmem>>, %arg6: memref<384x128xf32, #tpu.memory_space<vmem>>, %arg7: memref<1x128xf32, #tpu.memory_space<vmem>>, %arg8: memref<128x128xf32, #tpu.memory_space<vmem>>, %arg9: memref<1x128xf32, #tpu.memory_space<vmem>>, %arg10: memref<2x16x128xf32, #tpu.memory_space<vmem>>) attributes {dimension_semantics = [#tpu.dimension_semantics<parallel>], iteration_bounds = array<i64: 1>, scalar_prefetch = 0 : i64, scratch_operands = 0 : i64, tpu.core_type = #tpu.core_type<tc>, window_params = [{transform_indices = @transform_0, window_bounds = array<i64: 2, 16, 128>}, {pipeline_mode = #tpu.pipeline_mode<synchronous>, transform_indices = @transform_1, window_bounds = array<i64: 16, 128>}, {pipeline_mode = #tpu.pipeline_mode<synchronous>, transform_indices = @transform_2, window_bounds = array<i64: 384, 128>}, {pipeline_mode = #tpu.pipeline_mode<synchronous>, transform_indices = @transform_3, window_bounds = array<i64: 384, 128>}, {pipeline_mode = #tpu.pipeline_mode<synchronous>, transform_indices = @transform_4, window_bounds = array<i64: 1, 128>}, {pipeline_mode = #tpu.pipeline_mode<synchronous>, transform_indices = @transform_5, window_bounds = array<i64: 384, 128>}, {pipeline_mode = #tpu.pipeline_mode<synchronous>, transform_indices = @transform_6, window_bounds = array<i64: 1, 128>}, {pipeline_mode = #tpu.pipeline_mode<synchronous>, transform_indices = @transform_7, window_bounds = array<i64: 128, 128>}, {pipeline_mode = #tpu.pipeline_mode<synchronous>, transform_indices = @transform_8, window_bounds = array<i64: 1, 128>}, {transform_indices = @transform_9, window_bounds = array<i64: 2, 16, 128>}]} {
    %c0 = arith.constant 0 : index
    %c0_0 = arith.constant 0 : index
    %c0_1 = arith.constant 0 : index
    %0 = vector.load %arg1[%c0, %c0_0, %c0_1] : memref<2x16x128xf32, #tpu.memory_space<vmem>>, vector<2x16x128xf32>
    %c0_2 = arith.constant 0 : index
    %c0_3 = arith.constant 0 : index
    %1 = vector.load %arg3[%c0_2, %c0_3] : memref<384x128xf32, #tpu.memory_space<vmem>>, vector<384x128xf32>
    %2 = vector.extract_strided_slice %0 {offsets = [0, 15, 0], sizes = [2, 1, 128], strides = [1, 1, 1]} : vector<2x16x128xf32> to vector<2x1x128xf32>
    %3 = vector.extract_strided_slice %0 {offsets = [0, 0, 0], sizes = [2, 1, 128], strides = [1, 1, 1]} : vector<2x16x128xf32> to vector<2x1x128xf32>
    %4 = tpu.concatenate %2, %0, %3 in 1 : vector<2x1x128xf32>, vector<2x16x128xf32>, vector<2x1x128xf32> -> vector<2x18x128xf32>
    %5 = vector.extract_strided_slice %4 {offsets = [0, 0, 0], sizes = [2, 16, 128], strides = [1, 1, 1]} : vector<2x18x128xf32> to vector<2x16x128xf32>
    %6 = vector.extract_strided_slice %4 {offsets = [0, 1, 0], sizes = [2, 16, 128], strides = [1, 1, 1]} : vector<2x18x128xf32> to vector<2x16x128xf32>
    %7 = vector.extract_strided_slice %4 {offsets = [0, 2, 0], sizes = [2, 16, 128], strides = [1, 1, 1]} : vector<2x18x128xf32> to vector<2x16x128xf32>
    %8 = tpu.concatenate %5, %6, %7 in 2 : vector<2x16x128xf32>, vector<2x16x128xf32>, vector<2x16x128xf32> -> vector<2x16x384xf32>
    %9 = vector.shape_cast %8 : vector<2x16x384xf32> to vector<32x384xf32>
    %cst = arith.constant dense<0.000000e+00> : vector<32x128xf32>
    %10 = tpu.matmul %9, %1, %cst {dimension_numbers = #tpu.dot_dimension_numbers<[1], [0], [0], [1], [0, 0, 1, 1], [], []>} : vector<32x384xf32>, vector<384x128xf32>, vector<32x128xf32> -> vector<32x128xf32>
    %11 = vector.shape_cast %10 : vector<32x128xf32> to vector<2x16x128xf32>
    %c0_4 = arith.constant 0 : index
    %c0_5 = arith.constant 0 : index
    %12 = vector.load %arg2[%c0_4, %c0_5] : memref<16x128xf32, #tpu.memory_space<vmem>>, vector<16x128xf32>
    %13 = vector.shape_cast %12 : vector<16x128xf32> to vector<1x16x128xf32>
    %14 = vector.broadcast %13 : vector<1x16x128xf32> to vector<2x16x128xf32>
    %15 = arith.addf %11, %14 : vector<2x16x128xf32>
    %c0_6 = arith.constant 0 : index
    %c0_7 = arith.constant 0 : index
    %16 = vector.load %arg4[%c0_6, %c0_7] : memref<384x128xf32, #tpu.memory_space<vmem>>, vector<384x128xf32>
    %cst_8 = arith.constant 0.000000e+00 : f32
    %17 = vector.broadcast %cst_8 : f32 to vector<2x1x128xf32>
    %cst_9 = arith.constant 0.000000e+00 : f32
    %18 = vector.broadcast %cst_9 : f32 to vector<2x1x128xf32>
    %19 = tpu.concatenate %17, %15, %18 in 1 : vector<2x1x128xf32>, vector<2x16x128xf32>, vector<2x1x128xf32> -> vector<2x18x128xf32>
    %20 = vector.extract_strided_slice %19 {offsets = [0, 0, 0], sizes = [2, 16, 128], strides = [1, 1, 1]} : vector<2x18x128xf32> to vector<2x16x128xf32>
    %21 = vector.extract_strided_slice %19 {offsets = [0, 1, 0], sizes = [2, 16, 128], strides = [1, 1, 1]} : vector<2x18x128xf32> to vector<2x16x128xf32>
    %22 = vector.extract_strided_slice %19 {offsets = [0, 2, 0], sizes = [2, 16, 128], strides = [1, 1, 1]} : vector<2x18x128xf32> to vector<2x16x128xf32>
    %23 = tpu.concatenate %20, %21, %22 in 2 : vector<2x16x128xf32>, vector<2x16x128xf32>, vector<2x16x128xf32> -> vector<2x16x384xf32>
    %24 = vector.shape_cast %23 : vector<2x16x384xf32> to vector<32x384xf32>
    %cst_10 = arith.constant dense<0.000000e+00> : vector<32x128xf32>
    %25 = tpu.matmul %24, %16, %cst_10 {dimension_numbers = #tpu.dot_dimension_numbers<[1], [0], [0], [1], [0, 0, 1, 1], [], []>} : vector<32x384xf32>, vector<384x128xf32>, vector<32x128xf32> -> vector<32x128xf32>
    %26 = vector.shape_cast %25 : vector<32x128xf32> to vector<2x16x128xf32>
    %c0_11 = arith.constant 0 : index
    %c0_12 = arith.constant 0 : index
    %27 = vector.load %arg5[%c0_11, %c0_12] : memref<1x128xf32, #tpu.memory_space<vmem>>, vector<1x128xf32>
    %28 = vector.shape_cast %27 : vector<1x128xf32> to vector<1x1x128xf32>
    %29 = vector.broadcast %28 : vector<1x1x128xf32> to vector<2x16x128xf32>
    %30 = arith.addf %26, %29 : vector<2x16x128xf32>
    %cst_13 = arith.constant 0.000000e+00 : f32
    %31 = vector.broadcast %cst_13 : f32 to vector<2x16x128xf32>
    %32 = arith.cmpf ogt, %30, %31 : vector<2x16x128xf32>
    %cst_14 = arith.constant 0.000000e+00 : f32
    %33 = vector.broadcast %cst_14 : f32 to vector<2x16x128xf32>
    %34 = arith.minimumf %30, %33 : vector<2x16x128xf32>
    %35 = math.exp %34 : vector<2x16x128xf32>
    %cst_15 = arith.constant 1.000000e+00 : f32
    %36 = vector.broadcast %cst_15 : f32 to vector<2x16x128xf32>
    %37 = arith.subf %35, %36 : vector<2x16x128xf32>
    %38 = arith.select %32, %30, %37 : vector<2x16x128xi1>, vector<2x16x128xf32>
    %c0_16 = arith.constant 0 : index
    %c0_17 = arith.constant 0 : index
    %39 = vector.load %arg6[%c0_16, %c0_17] : memref<384x128xf32, #tpu.memory_space<vmem>>, vector<384x128xf32>
    %cst_18 = arith.constant 0.000000e+00 : f32
    %40 = vector.broadcast %cst_18 : f32 to vector<2x1x128xf32>
    %cst_19 = arith.constant 0.000000e+00 : f32
    %41 = vector.broadcast %cst_19 : f32 to vector<2x1x128xf32>
    %42 = tpu.concatenate %40, %38, %41 in 1 : vector<2x1x128xf32>, vector<2x16x128xf32>, vector<2x1x128xf32> -> vector<2x18x128xf32>
    %43 = vector.extract_strided_slice %42 {offsets = [0, 0, 0], sizes = [2, 16, 128], strides = [1, 1, 1]} : vector<2x18x128xf32> to vector<2x16x128xf32>
    %44 = vector.extract_strided_slice %42 {offsets = [0, 1, 0], sizes = [2, 16, 128], strides = [1, 1, 1]} : vector<2x18x128xf32> to vector<2x16x128xf32>
    %45 = vector.extract_strided_slice %42 {offsets = [0, 2, 0], sizes = [2, 16, 128], strides = [1, 1, 1]} : vector<2x18x128xf32> to vector<2x16x128xf32>
    %46 = tpu.concatenate %43, %44, %45 in 2 : vector<2x16x128xf32>, vector<2x16x128xf32>, vector<2x16x128xf32> -> vector<2x16x384xf32>
    %47 = vector.shape_cast %46 : vector<2x16x384xf32> to vector<32x384xf32>
    %cst_20 = arith.constant dense<0.000000e+00> : vector<32x128xf32>
    %48 = tpu.matmul %47, %39, %cst_20 {dimension_numbers = #tpu.dot_dimension_numbers<[1], [0], [0], [1], [0, 0, 1, 1], [], []>} : vector<32x384xf32>, vector<384x128xf32>, vector<32x128xf32> -> vector<32x128xf32>
    %49 = vector.shape_cast %48 : vector<32x128xf32> to vector<2x16x128xf32>
    %c0_21 = arith.constant 0 : index
    %c0_22 = arith.constant 0 : index
    %50 = vector.load %arg7[%c0_21, %c0_22] : memref<1x128xf32, #tpu.memory_space<vmem>>, vector<1x128xf32>
    %51 = vector.shape_cast %50 : vector<1x128xf32> to vector<1x1x128xf32>
    %52 = vector.broadcast %51 : vector<1x1x128xf32> to vector<2x16x128xf32>
    %53 = arith.addf %49, %52 : vector<2x16x128xf32>
    %cst_23 = arith.constant 0.000000e+00 : f32
    %54 = vector.broadcast %cst_23 : f32 to vector<2x16x128xf32>
    %55 = arith.cmpf ogt, %53, %54 : vector<2x16x128xf32>
    %cst_24 = arith.constant 0.000000e+00 : f32
    %56 = vector.broadcast %cst_24 : f32 to vector<2x16x128xf32>
    %57 = arith.minimumf %53, %56 : vector<2x16x128xf32>
    %58 = math.exp %57 : vector<2x16x128xf32>
    %cst_25 = arith.constant 1.000000e+00 : f32
    %59 = vector.broadcast %cst_25 : f32 to vector<2x16x128xf32>
    %60 = arith.subf %58, %59 : vector<2x16x128xf32>
    %61 = arith.select %55, %53, %60 : vector<2x16x128xi1>, vector<2x16x128xf32>
    %c0_26 = arith.constant 0 : index
    %c0_27 = arith.constant 0 : index
    %62 = vector.load %arg8[%c0_26, %c0_27] : memref<128x128xf32, #tpu.memory_space<vmem>>, vector<128x128xf32>
    %63 = vector.shape_cast %61 : vector<2x16x128xf32> to vector<32x128xf32>
    %cst_28 = arith.constant dense<0.000000e+00> : vector<32x128xf32>
    %64 = tpu.matmul %63, %62, %cst_28 {dimension_numbers = #tpu.dot_dimension_numbers<[1], [0], [0], [1], [0, 0, 1, 1], [], []>} : vector<32x128xf32>, vector<128x128xf32>, vector<32x128xf32> -> vector<32x128xf32>
    %65 = vector.shape_cast %64 : vector<32x128xf32> to vector<2x16x128xf32>
    %c0_29 = arith.constant 0 : index
    %c0_30 = arith.constant 0 : index
    %66 = vector.load %arg9[%c0_29, %c0_30] : memref<1x128xf32, #tpu.memory_space<vmem>>, vector<1x128xf32>
    %67 = vector.shape_cast %66 : vector<1x128xf32> to vector<1x1x128xf32>
    %68 = vector.broadcast %67 : vector<1x1x128xf32> to vector<2x16x128xf32>
    %69 = arith.addf %65, %68 : vector<2x16x128xf32>
    %c0_31 = arith.constant 0 : index
    %c0_32 = arith.constant 0 : index
    %c0_33 = arith.constant 0 : index
    %70 = vector.load %arg10[%c0_31, %c0_32, %c0_33] : memref<2x16x128xf32, #tpu.memory_space<vmem>>, vector<2x16x128xf32>
    tpu.vector_store %arg10[%c0_31, %c0_32, %c0_33], %69 {strides = array<i32>} : memref<2x16x128xf32, #tpu.memory_space<vmem>>, vector<2x16x128xf32>,
    return
  }
  func.func @transform_0(%arg0: i32) -> (i32, i32, i32) {
    %c0_i32 = arith.constant 0 : i32
    %c0_i32_0 = arith.constant 0 : i32
    %c0_i32_1 = arith.constant 0 : i32
    return %arg0, %c0_i32, %c0_i32_0 : i32, i32, i32
  }
  func.func @transform_1(%arg0: i32) -> (i32, i32) {
    %c0_i32 = arith.constant 0 : i32
    %c0_i32_0 = arith.constant 0 : i32
    %c0_i32_1 = arith.constant 0 : i32
    return %c0_i32, %c0_i32_0 : i32, i32
  }
  func.func @transform_2(%arg0: i32) -> (i32, i32) {
    %c0_i32 = arith.constant 0 : i32
    %c0_i32_0 = arith.constant 0 : i32
    %c0_i32_1 = arith.constant 0 : i32
    return %c0_i32, %c0_i32_0 : i32, i32
  }
  func.func @transform_3(%arg0: i32) -> (i32, i32) {
    %c0_i32 = arith.constant 0 : i32
    %c0_i32_0 = arith.constant 0 : i32
    %c0_i32_1 = arith.constant 0 : i32
    return %c0_i32, %c0_i32_0 : i32, i32
  }
  func.func @transform_4(%arg0: i32) -> (i32, i32) {
    %c0_i32 = arith.constant 0 : i32
    %c0_i32_0 = arith.constant 0 : i32
    %c0_i32_1 = arith.constant 0 : i32
    return %c0_i32, %c0_i32_0 : i32, i32
  }
  func.func @transform_5(%arg0: i32) -> (i32, i32) {
    %c0_i32 = arith.constant 0 : i32
    %c0_i32_0 = arith.constant 0 : i32
    %c0_i32_1 = arith.constant 0 : i32
    return %c0_i32, %c0_i32_0 : i32, i32
  }
  func.func @transform_6(%arg0: i32) -> (i32, i32) {
    %c0_i32 = arith.constant 0 : i32
    %c0_i32_0 = arith.constant 0 : i32
    %c0_i32_1 = arith.constant 0 : i32
    return %c0_i32, %c0_i32_0 : i32, i32
  }
  func.func @transform_7(%arg0: i32) -> (i32, i32) {
    %c0_i32 = arith.constant 0 : i32
    %c0_i32_0 = arith.constant 0 : i32
    %c0_i32_1 = arith.constant 0 : i32
    return %c0_i32, %c0_i32_0 : i32, i32
  }
  func.func @transform_8(%arg0: i32) -> (i32, i32) {
    %c0_i32 = arith.constant 0 : i32
    %c0_i32_0 = arith.constant 0 : i32
    %c0_i32_1 = arith.constant 0 : i32
    return %c0_i32, %c0_i32_0 : i32, i32
  }
  func.func @transform_9(%arg0: i32) -> (i32, i32, i32) {
    %c0_i32 = arith.constant 0 : i32
    %c0_i32_0 = arith.constant 0 : i32
    %c0_i32_1 = arith.constant 0 : i32
    return %arg0, %c0_i32, %c0_i32_0 : i32, i32, i32
  }
}

module attributes {stable_mosaic.version = 11 : i64} {
  func.func @_fused_time_block_kernel(%arg0: i32, %arg1: memref<2x16x128xf32, #tpu.memory_space<vmem>>, %arg2: memref<16x128xf32, #tpu.memory_space<vmem>>, %arg3: memref<384x128xf32, #tpu.memory_space<vmem>>, %arg4: memref<384x128xf32, #tpu.memory_space<vmem>>, %arg5: memref<1x128xf32, #tpu.memory_space<vmem>>, %arg6: memref<384x128xf32, #tpu.memory_space<vmem>>, %arg7: memref<1x128xf32, #tpu.memory_space<vmem>>, %arg8: memref<128x128xf32, #tpu.memory_space<vmem>>, %arg9: memref<1x128xf32, #tpu.memory_space<vmem>>, %arg10: memref<2x16x128xf32, #tpu.memory_space<vmem>>) attributes {dimension_semantics = [#tpu.dimension_semantics<parallel>], iteration_bounds = array<i64: 1>, scalar_prefetch = 0 : i64, scratch_operands = 0 : i64, tpu.core_type = #tpu.core_type<tc>, window_params = [{transform_indices = @transform_0, window_bounds = array<i64: 2, 16, 128>}, {pipeline_mode = #tpu.pipeline_mode<synchronous>, transform_indices = @transform_1, window_bounds = array<i64: 16, 128>}, {pipeline_mode = #tpu.pipeline_mode<synchronous>, transform_indices = @transform_2, window_bounds = array<i64: 384, 128>}, {pipeline_mode = #tpu.pipeline_mode<synchronous>, transform_indices = @transform_3, window_bounds = array<i64: 384, 128>}, {pipeline_mode = #tpu.pipeline_mode<synchronous>, transform_indices = @transform_4, window_bounds = array<i64: 1, 128>}, {pipeline_mode = #tpu.pipeline_mode<synchronous>, transform_indices = @transform_5, window_bounds = array<i64: 384, 128>}, {pipeline_mode = #tpu.pipeline_mode<synchronous>, transform_indices = @transform_6, window_bounds = array<i64: 1, 128>}, {pipeline_mode = #tpu.pipeline_mode<synchronous>, transform_indices = @transform_7, window_bounds = array<i64: 128, 128>}, {pipeline_mode = #tpu.pipeline_mode<synchronous>, transform_indices = @transform_8, window_bounds = array<i64: 1, 128>}, {transform_indices = @transform_9, window_bounds = array<i64: 2, 16, 128>}]} {
    %c0 = arith.constant 0 : index
    %c0_0 = arith.constant 0 : index
    %c0_1 = arith.constant 0 : index
    %0 = vector.load %arg1[%c0, %c0_0, %c0_1] : memref<2x16x128xf32, #tpu.memory_space<vmem>>, vector<2x16x128xf32>
    %c0_2 = arith.constant 0 : index
    %c0_3 = arith.constant 0 : index
    %1 = vector.load %arg3[%c0_2, %c0_3] : memref<384x128xf32, #tpu.memory_space<vmem>>, vector<384x128xf32>
    %2 = vector.extract_strided_slice %0 {offsets = [0, 15, 0], sizes = [2, 1, 128], strides = [1, 1, 1]} : vector<2x16x128xf32> to vector<2x1x128xf32>
    %3 = vector.extract_strided_slice %0 {offsets = [0, 0, 0], sizes = [2, 1, 128], strides = [1, 1, 1]} : vector<2x16x128xf32> to vector<2x1x128xf32>
    %4 = tpu.concatenate %2, %0, %3 in 1 : vector<2x1x128xf32>, vector<2x16x128xf32>, vector<2x1x128xf32> -> vector<2x18x128xf32>
    %5 = vector.extract_strided_slice %4 {offsets = [0, 0, 0], sizes = [2, 16, 128], strides = [1, 1, 1]} : vector<2x18x128xf32> to vector<2x16x128xf32>
    %6 = vector.extract_strided_slice %4 {offsets = [0, 1, 0], sizes = [2, 16, 128], strides = [1, 1, 1]} : vector<2x18x128xf32> to vector<2x16x128xf32>
    %7 = vector.extract_strided_slice %4 {offsets = [0, 2, 0], sizes = [2, 16, 128], strides = [1, 1, 1]} : vector<2x18x128xf32> to vector<2x16x128xf32>
    %8 = tpu.concatenate %5, %6, %7 in 2 : vector<2x16x128xf32>, vector<2x16x128xf32>, vector<2x16x128xf32> -> vector<2x16x384xf32>
    %9 = vector.shape_cast %8 : vector<2x16x384xf32> to vector<32x384xf32>
    %cst = arith.constant dense<0.000000e+00> : vector<32x128xf32>
    %10 = tpu.matmul %9, %1, %cst {dimension_numbers = #tpu.dot_dimension_numbers<[1], [0], [0], [1], [0, 0, 1, 1], [], []>} : vector<32x384xf32>, vector<384x128xf32>, vector<32x128xf32> -> vector<32x128xf32>
    %11 = vector.shape_cast %10 : vector<32x128xf32> to vector<2x16x128xf32>
    %c0_4 = arith.constant 0 : index
    %c0_5 = arith.constant 0 : index
    %12 = vector.load %arg2[%c0_4, %c0_5] : memref<16x128xf32, #tpu.memory_space<vmem>>, vector<16x128xf32>
    %13 = vector.shape_cast %12 : vector<16x128xf32> to vector<1x16x128xf32>
    %14 = vector.broadcast %13 : vector<1x16x128xf32> to vector<2x16x128xf32>
    %15 = arith.addf %11, %14 : vector<2x16x128xf32>
    %c0_6 = arith.constant 0 : index
    %c0_7 = arith.constant 0 : index
    %16 = vector.load %arg4[%c0_6, %c0_7] : memref<384x128xf32, #tpu.memory_space<vmem>>, vector<384x128xf32>
    %cst_8 = arith.constant 0.000000e+00 : f32
    %17 = vector.broadcast %cst_8 : f32 to vector<2x1x128xf32>
    %cst_9 = arith.constant 0.000000e+00 : f32
    %18 = vector.broadcast %cst_9 : f32 to vector<2x1x128xf32>
    %19 = tpu.concatenate %17, %15, %18 in 1 : vector<2x1x128xf32>, vector<2x16x128xf32>, vector<2x1x128xf32> -> vector<2x18x128xf32>
    %20 = vector.extract_strided_slice %19 {offsets = [0, 0, 0], sizes = [2, 16, 128], strides = [1, 1, 1]} : vector<2x18x128xf32> to vector<2x16x128xf32>
    %21 = vector.extract_strided_slice %19 {offsets = [0, 1, 0], sizes = [2, 16, 128], strides = [1, 1, 1]} : vector<2x18x128xf32> to vector<2x16x128xf32>
    %22 = vector.extract_strided_slice %19 {offsets = [0, 2, 0], sizes = [2, 16, 128], strides = [1, 1, 1]} : vector<2x18x128xf32> to vector<2x16x128xf32>
    %23 = tpu.concatenate %20, %21, %22 in 2 : vector<2x16x128xf32>, vector<2x16x128xf32>, vector<2x16x128xf32> -> vector<2x16x384xf32>
    %24 = vector.shape_cast %23 : vector<2x16x384xf32> to vector<32x384xf32>
    %cst_10 = arith.constant dense<0.000000e+00> : vector<32x128xf32>
    %25 = tpu.matmul %24, %16, %cst_10 {dimension_numbers = #tpu.dot_dimension_numbers<[1], [0], [0], [1], [0, 0, 1, 1], [], []>} : vector<32x384xf32>, vector<384x128xf32>, vector<32x128xf32> -> vector<32x128xf32>
    %26 = vector.shape_cast %25 : vector<32x128xf32> to vector<2x16x128xf32>
    %c0_11 = arith.constant 0 : index
    %c0_12 = arith.constant 0 : index
    %27 = vector.load %arg5[%c0_11, %c0_12] : memref<1x128xf32, #tpu.memory_space<vmem>>, vector<1x128xf32>
    %28 = vector.shape_cast %27 : vector<1x128xf32> to vector<1x1x128xf32>
    %29 = vector.broadcast %28 : vector<1x1x128xf32> to vector<2x16x128xf32>
    %30 = arith.addf %26, %29 : vector<2x16x128xf32>
    %cst_13 = arith.constant 0.000000e+00 : f32
    %31 = vector.broadcast %cst_13 : f32 to vector<2x16x128xf32>
    %32 = arith.cmpf ogt, %30, %31 : vector<2x16x128xf32>
    %cst_14 = arith.constant 0.000000e+00 : f32
    %33 = vector.broadcast %cst_14 : f32 to vector<2x16x128xf32>
    %34 = arith.minimumf %30, %33 : vector<2x16x128xf32>
    %35 = math.exp %34 : vector<2x16x128xf32>
    %cst_15 = arith.constant 1.000000e+00 : f32
    %36 = vector.broadcast %cst_15 : f32 to vector<2x16x128xf32>
    %37 = arith.subf %35, %36 : vector<2x16x128xf32>
    %38 = arith.select %32, %30, %37 : vector<2x16x128xi1>, vector<2x16x128xf32>
    %c0_16 = arith.constant 0 : index
    %c0_17 = arith.constant 0 : index
    %39 = vector.load %arg6[%c0_16, %c0_17] : memref<384x128xf32, #tpu.memory_space<vmem>>, vector<384x128xf32>
    %cst_18 = arith.constant 0.000000e+00 : f32
    %40 = vector.broadcast %cst_18 : f32 to vector<2x1x128xf32>
    %cst_19 = arith.constant 0.000000e+00 : f32
    %41 = vector.broadcast %cst_19 : f32 to vector<2x1x128xf32>
    %42 = tpu.concatenate %40, %38, %41 in 1 : vector<2x1x128xf32>, vector<2x16x128xf32>, vector<2x1x128xf32> -> vector<2x18x128xf32>
    %43 = vector.extract_strided_slice %42 {offsets = [0, 0, 0], sizes = [2, 16, 128], strides = [1, 1, 1]} : vector<2x18x128xf32> to vector<2x16x128xf32>
    %44 = vector.extract_strided_slice %42 {offsets = [0, 1, 0], sizes = [2, 16, 128], strides = [1, 1, 1]} : vector<2x18x128xf32> to vector<2x16x128xf32>
    %45 = vector.extract_strided_slice %42 {offsets = [0, 2, 0], sizes = [2, 16, 128], strides = [1, 1, 1]} : vector<2x18x128xf32> to vector<2x16x128xf32>
    %46 = tpu.concatenate %43, %44, %45 in 2 : vector<2x16x128xf32>, vector<2x16x128xf32>, vector<2x16x128xf32> -> vector<2x16x384xf32>
    %47 = vector.shape_cast %46 : vector<2x16x384xf32> to vector<32x384xf32>
    %cst_20 = arith.constant dense<0.000000e+00> : vector<32x128xf32>
    %48 = tpu.matmul %47, %39, %cst_20 {dimension_numbers = #tpu.dot_dimension_numbers<[1], [0], [0], [1], [0, 0, 1, 1], [], []>} : vector<32x384xf32>, vector<384x128xf32>, vector<32x128xf32> -> vector<32x128xf32>
    %49 = vector.shape_cast %48 : vector<32x128xf32> to vector<2x16x128xf32>
    %c0_21 = arith.constant 0 : index
    %c0_22 = arith.constant 0 : index
    %50 = vector.load %arg7[%c0_21, %c0_22] : memref<1x128xf32, #tpu.memory_space<vmem>>, vector<1x128xf32>
    %51 = vector.shape_cast %50 : vector<1x128xf32> to vector<1x1x128xf32>
    %52 = vector.broadcast %51 : vector<1x1x128xf32> to vector<2x16x128xf32>
    %53 = arith.addf %49, %52 : vector<2x16x128xf32>
    %cst_23 = arith.constant 0.000000e+00 : f32
    %54 = vector.broadcast %cst_23 : f32 to vector<2x16x128xf32>
    %55 = arith.cmpf ogt, %53, %54 : vector<2x16x128xf32>
    %cst_24 = arith.constant 0.000000e+00 : f32
    %56 = vector.broadcast %cst_24 : f32 to vector<2x16x128xf32>
    %57 = arith.minimumf %53, %56 : vector<2x16x128xf32>
    %58 = math.exp %57 : vector<2x16x128xf32>
    %cst_25 = arith.constant 1.000000e+00 : f32
    %59 = vector.broadcast %cst_25 : f32 to vector<2x16x128xf32>
    %60 = arith.subf %58, %59 : vector<2x16x128xf32>
    %61 = arith.select %55, %53, %60 : vector<2x16x128xi1>, vector<2x16x128xf32>
    %c0_26 = arith.constant 0 : index
    %c0_27 = arith.constant 0 : index
    %62 = vector.load %arg8[%c0_26, %c0_27] : memref<128x128xf32, #tpu.memory_space<vmem>>, vector<128x128xf32>
    %63 = vector.shape_cast %61 : vector<2x16x128xf32> to vector<32x128xf32>
    %cst_28 = arith.constant dense<0.000000e+00> : vector<32x128xf32>
    %64 = tpu.matmul %63, %62, %cst_28 {dimension_numbers = #tpu.dot_dimension_numbers<[1], [0], [0], [1], [0, 0, 1, 1], [], []>} : vector<32x128xf32>, vector<128x128xf32>, vector<32x128xf32> -> vector<32x128xf32>
    %65 = vector.shape_cast %64 : vector<32x128xf32> to vector<2x16x128xf32>
    %c0_29 = arith.constant 0 : index
    %c0_30 = arith.constant 0 : index
    %66 = vector.load %arg9[%c0_29, %c0_30] : memref<1x128xf32, #tpu.memory_space<vmem>>, vector<1x128xf32>
    %67 = vector.shape_cast %66 : vector<1x128xf32> to vector<1x1x128xf32>
    %68 = vector.broadcast %67 : vector<1x1x128xf32> to vector<2x16x128xf32>
    %69 = arith.addf %65, %68 : vector<2x16x128xf32>
    %c0_31 = arith.constant 0 : index
    %c0_32 = arith.constant 0 : index
    %c0_33 = arith.constant 0 : index
    %70 = vector.load %arg10[%c0_31, %c0_32, %c0_33] : memref<2x16x128xf32, #tpu.memory_space<vmem>>, vector<2x16x128xf32>
    tpu.vector_store %arg10[%c0_31, %c0_32, %c0_33], %69 {strides = array<i32>} : memref<2x16x128xf32, #tpu.memory_space<vmem>>, vector<2x16x128xf32>,
    return
  }
  func.func @transform_0(%arg0: i32) -> (i32, i32, i32) {
    %c0_i32 = arith.constant 0 : i32
    %c0_i32_0 = arith.constant 0 : i32
    %c0_i32_1 = arith.constant 0 : i32
    return %arg0, %c0_i32, %c0_i32_0 : i32, i32, i32
  }
  func.func @transform_1(%arg0: i32) -> (i32, i32) {
    %c0_i32 = arith.constant 0 : i32
    %c0_i32_0 = arith.constant 0 : i32
    %c0_i32_1 = arith.constant 0 : i32
    return %c0_i32, %c0_i32_0 : i32, i32
  }
  func.func @transform_2(%arg0: i32) -> (i32, i32) {
    %c0_i32 = arith.constant 0 : i32
    %c0_i32_0 = arith.constant 0 : i32
    %c0_i32_1 = arith.constant 0 : i32
    return %c0_i32, %c0_i32_0 : i32, i32
  }
  func.func @transform_3(%arg0: i32) -> (i32, i32) {
    %c0_i32 = arith.constant 0 : i32
    %c0_i32_0 = arith.constant 0 : i32
    %c0_i32_1 = arith.constant 0 : i32
    return %c0_i32, %c0_i32_0 : i32, i32
  }
  func.func @transform_4(%arg0: i32) -> (i32, i32) {
    %c0_i32 = arith.constant 0 : i32
    %c0_i32_0 = arith.constant 0 : i32
    %c0_i32_1 = arith.constant 0 : i32
    return %c0_i32, %c0_i32_0 : i32, i32
  }
  func.func @transform_5(%arg0: i32) -> (i32, i32) {
    %c0_i32 = arith.constant 0 : i32
    %c0_i32_0 = arith.constant 0 : i32
    %c0_i32_1 = arith.constant 0 : i32
    return %c0_i32, %c0_i32_0 : i32, i32
  }
  func.func @transform_6(%arg0: i32) -> (i32, i32) {
    %c0_i32 = arith.constant 0 : i32
    %c0_i32_0 = arith.constant 0 : i32
    %c0_i32_1 = arith.constant 0 : i32
    return %c0_i32, %c0_i32_0 : i32, i32
  }
  func.func @transform_7(%arg0: i32) -> (i32, i32) {
    %c0_i32 = arith.constant 0 : i32
    %c0_i32_0 = arith.constant 0 : i32
    %c0_i32_1 = arith.constant 0 : i32
    return %c0_i32, %c0_i32_0 : i32, i32
  }
  func.func @transform_8(%arg0: i32) -> (i32, i32) {
    %c0_i32 = arith.constant 0 : i32
    %c0_i32_0 = arith.constant 0 : i32
    %c0_i32_1 = arith.constant 0 : i32
    return %c0_i32, %c0_i32_0 : i32, i32
  }
  func.func @transform_9(%arg0: i32) -> (i32, i32, i32) {
    %c0_i32 = arith.constant 0 : i32
    %c0_i32_0 = arith.constant 0 : i32
    %c0_i32_1 = arith.constant 0 : i32
    return %arg0, %c0_i32, %c0_i32_0 : i32, i32, i32
  }
}

</mosaic_0001>

<llo_original>
// kernel: tpu_custom_call.1
$region0: #{tpu_custom_call.1}
  #allocation0 [shape = 'u32[]', space=smem, size = 0x4, offset = 0x4, fixed_abs, tag = 'smem constant byte address 0x4 - core index']
  #allocation1 [shape = 'u32[72,128]{1,0:T(1,128)}', space=vmem, size = 0x9000, scoped, tag = 'internal scratch']
  %s0 = inlined_call_operand.hbm [shape: f32[2,16,128], index: 0, kind: input, shape index: {}]
  %s1 = inlined_call_operand.hbm [shape: f32[16,128], index: 1, kind: input, shape index: {}]
  %s2 = inlined_call_operand.hbm [shape: f32[384,128], index: 2, kind: input, shape index: {}]
  %s3 = inlined_call_operand.hbm [shape: f32[384,128], index: 3, kind: input, shape index: {}]
  %s4 = inlined_call_operand.vmem [shape: f32[1,128], index: 4, kind: input, shape index: {}]
  %s5 = inlined_call_operand.hbm [shape: f32[384,128], index: 5, kind: input, shape index: {}]
  %s6 = inlined_call_operand.vmem [shape: f32[1,128], index: 6, kind: input, shape index: {}]
  %s7 = inlined_call_operand.hbm [shape: f32[128,128], index: 7, kind: input, shape index: {}]
  %s8 = inlined_call_operand.vmem [shape: f32[1,128], index: 8, kind: input, shape index: {}]
  %s9 = inlined_call_operand.hbm [shape: f32[2,16,128], index: 9, kind: output, shape index: {}]
  %s10 = sld [smem:[#allocation0]]
  $region70: #{tpu_custom_call.1} parent=0
    _
  %s12 = ssub.s32 1, %s10
  %s13 = scalar_select 0, %s12, %s10
  $region1: #{tpu_custom_call.1} parent=0
    #allocation2 [shape = 'u8[16384]{0}', space=vmem, size = 0x4000, scoped, tag = 'input window, operand 0, single buffered']
    #allocation3 [shape = 's32[1]{0}', space=sflag, size = 0x4, scoped, tag = 'scoped memory for tpu_custom_call.1']
    #allocation4 [shape = 's32[1]{0}', space=sflag, size = 0x4, scoped, tag = 'scoped memory for tpu_custom_call.1']
    #allocation5 [shape = 'u8[8192]{0}', space=vmem, size = 0x2000, scoped, tag = 'input window, operand 1, single buffered']
    #allocation6 [shape = 's32[1]{0}', space=sflag, size = 0x4, scoped, tag = 'scoped memory for tpu_custom_call.1']
    #allocation7 [shape = 'u8[196608]{0}', space=vmem, size = 0x30000, scoped, tag = 'input window, operand 2, single buffered']
    #allocation8 [shape = 'u8[196608]{0}', space=vmem, size = 0x30000, scoped, tag = 'input window, operand 3, single buffered']
    #allocation9 [shape = 's32[1]{0}', space=sflag, size = 0x4, scoped, tag = 'scoped memory for tpu_custom_call.1']
    #allocation10 [shape = 'u8[196608]{0}', space=vmem, size = 0x30000, scoped, tag = 'input window, operand 5, single buffered']
    #allocation11 [shape = 'u8[65536]{0}', space=vmem, size = 0x10000, scoped, tag = 'input window, operand 7, single buffered']
    #allocation12 [shape = 's32[1]{0}', space=sflag, size = 0x4, scoped, tag = 'scoped memory for tpu_custom_call.1']
    #allocation13 [shape = 'u8[16384]{0}', space=vmem, size = 0x4000, scoped, tag = 'output window, operand 0, single buffered']
    %14 = vsyncpa [#allocation3], 0
    %15 = vsyncpa [#allocation6], 0
    %16 = vsyncpa [#allocation9], 0
    %17 = vsyncpa [#allocation12], 0
    %18 = vsyncpa [#allocation4], 0
    // Predicated region
    $region2: #{tpu_custom_call.1} parent=1 // pred_check
      _
    $region3: #{tpu_custom_call.1} parent=1 // pred_check_branch
      %20 = sbr.rel (0) target = $region5
    $region4: #{tpu_custom_call.1} parent=1 // pred_region
      %22 = vsyncadd [#allocation3], 0
      %s23 = sshll.u32 %s0, 4
      %s24 = int_to_ptr.hbm [resolvable:$true] %s23
      %s25 = sshll.u32 [#allocation2], 4
      %s26 = int_to_ptr.vmem [resolvable:$true] %s25
      %31 = dma.hbm_to_vmem [thread:$0]  %s24, 512, %s26, [#allocation3], 128, 128, 8
    $region5: #{tpu_custom_call.1} parent=1 // pred_fallthru
      _
    // Predicated region
    $region6: #{tpu_custom_call.1} parent=1 // pred_check
      _
    $region7: #{tpu_custom_call.1} parent=1 // pred_check_branch
      %33 = sbr.rel (0) target = $region9
    $region8: #{tpu_custom_call.1} parent=1 // pred_region
      %35 = vsyncadd [#allocation6], 0
      %s36 = sshll.u32 %s1, 4
      %s37 = int_to_ptr.hbm [resolvable:$true] %s36
      %s38 = sshll.u32 [#allocation5], 4
      %s39 = int_to_ptr.vmem [resolvable:$true] %s38
      %44 = dma.hbm_to_vmem [thread:$0]  %s37, 256, %s39, [#allocation6], 128, 128, 8
    $region9: #{tpu_custom_call.1} parent=1 // pred_fallthru
      _
    // Predicated region
    $region10: #{tpu_custom_call.1} parent=1 // pred_check
      _
    $region11: #{tpu_custom_call.1} parent=1 // pred_check_branch
      %46 = sbr.rel (0) target = $region13
    $region12: #{tpu_custom_call.1} parent=1 // pred_region
      %48 = vsyncadd [#allocation6], 0
      %s49 = sshll.u32 %s2, 4
      %s50 = int_to_ptr.hbm [resolvable:$true] %s49
      %s51 = sshll.u32 [#allocation7], 4
      %s52 = int_to_ptr.vmem [resolvable:$true] %s51
      %57 = dma.hbm_to_vmem [thread:$0]  %s50, 6144, %s52, [#allocation6], 128, 128, 8
    $region13: #{tpu_custom_call.1} parent=1 // pred_fallthru
      _
    // Predicated region
    $region14: #{tpu_custom_call.1} parent=1 // pred_check
      _
    $region15: #{tpu_custom_call.1} parent=1 // pred_check_branch
      %59 = sbr.rel (0) target = $region17
    $region16: #{tpu_custom_call.1} parent=1 // pred_region
      %61 = vsyncadd [#allocation9], 0
      %s62 = sshll.u32 %s3, 4
      %s63 = int_to_ptr.hbm [resolvable:$true] %s62
      %s64 = sshll.u32 [#allocation8], 4
      %s65 = int_to_ptr.vmem [resolvable:$true] %s64
      %70 = dma.hbm_to_vmem [thread:$0]  %s63, 6144, %s65, [#allocation9], 128, 128, 8
    $region17: #{tpu_custom_call.1} parent=1 // pred_fallthru
      _
    // Predicated region
    $region18: #{tpu_custom_call.1} parent=1 // pred_check
      _
    $region19: #{tpu_custom_call.1} parent=1 // pred_check_branch
      %72 = sbr.rel (0) target = $region21
    $region20: #{tpu_custom_call.1} parent=1 // pred_region
      _
    $region21: #{tpu_custom_call.1} parent=1 // pred_fallthru
      _
    // Predicated region
    $region22: #{tpu_custom_call.1} parent=1 // pred_check
      _
    $region23: #{tpu_custom_call.1} parent=1 // pred_check_branch
      %74 = sbr.rel (0) target = $region25
    $region24: #{tpu_custom_call.1} parent=1 // pred_region
      %76 = vsyncadd [#allocation9], 0
      %s77 = sshll.u32 %s5, 4
      %s78 = int_to_ptr.hbm [resolvable:$true] %s77
      %s79 = sshll.u32 [#allocation10], 4
      %s80 = int_to_ptr.vmem [resolvable:$true] %s79
      %85 = dma.hbm_to_vmem [thread:$0]  %s78, 6144, %s80, [#allocation9], 128, 128, 8
    $region25: #{tpu_custom_call.1} parent=1 // pred_fallthru
      _
    // Predicated region
    $region26: #{tpu_custom_call.1} parent=1 // pred_check
      _
    $region27: #{tpu_custom_call.1} parent=1 // pred_check_branch
      %87 = sbr.rel (0) target = $region29
    $region28: #{tpu_custom_call.1} parent=1 // pred_region
      _
    $region29: #{tpu_custom_call.1} parent=1 // pred_fallthru
      _
    // Predicated region
    $region30: #{tpu_custom_call.1} parent=1 // pred_check
      _
    $region31: #{tpu_custom_call.1} parent=1 // pred_check_branch
      %89 = sbr.rel (0) target = $region33
    $region32: #{tpu_custom_call.1} parent=1 // pred_region
      %91 = vsyncadd [#allocation12], 0
      %s92 = sshll.u32 %s7, 4
      %s93 = int_to_ptr.hbm [resolvable:$true] %s92
      %s94 = sshll.u32 [#allocation11], 4
      %s95 = int_to_ptr.vmem [resolvable:$true] %s94
      %100 = dma.hbm_to_vmem [thread:$0]  %s93, 2048, %s95, [#allocation12], 128, 128, 8
    $region33: #{tpu_custom_call.1} parent=1 // pred_fallthru
      _
    // Predicated region
    $region34: #{tpu_custom_call.1} parent=1 // pred_check
      _
    $region35: #{tpu_custom_call.1} parent=1 // pred_check_branch
      %102 = sbr.rel (0) target = $region37
    $region36: #{tpu_custom_call.1} parent=1 // pred_region
      _
    $region37: #{tpu_custom_call.1} parent=1 // pred_fallthru
      _
    // Predicated region
    $region38: #{tpu_custom_call.1} parent=1 // pred_check
      _
    $region39: #{tpu_custom_call.1} parent=1 // pred_check_branch
      %104 = sbr.rel (0) target = $region41
    $region40: #{tpu_custom_call.1} parent=1 // pred_region
      %106 = dma.done [#allocation3], 512
    $region41: #{tpu_custom_call.1} parent=1 // pred_fallthru
      _
    // Predicated region
    $region42: #{tpu_custom_call.1} parent=1 // pred_check
      _
    $region43: #{tpu_custom_call.1} parent=1 // pred_check_branch
      %108 = sbr.rel (0) target = $region45
    $region44: #{tpu_custom_call.1} parent=1 // pred_region
      %110 = dma.done [#allocation6], 256
    $region45: #{tpu_custom_call.1} parent=1 // pred_fallthru
      _
    // Predicated region
    $region46: #{tpu_custom_call.1} parent=1 // pred_check
      _
    $region47: #{tpu_custom_call.1} parent=1 // pred_check_branch
      %112 = sbr.rel (0) target = $region49
    $region48: #{tpu_custom_call.1} parent=1 // pred_region
      %114 = dma.done [#allocation6], 6144
    $region49: #{tpu_custom_call.1} parent=1 // pred_fallthru
      _
    // Predicated region
    $region50: #{tpu_custom_call.1} parent=1 // pred_check
      _
    $region51: #{tpu_custom_call.1} parent=1 // pred_check_branch
      %116 = sbr.rel (0) target = $region53
    $region52: #{tpu_custom_call.1} parent=1 // pred_region
      %118 = dma.done [#allocation9], 6144
    $region53: #{tpu_custom_call.1} parent=1 // pred_fallthru
      _
    // Predicated region
    $region54: #{tpu_custom_call.1} parent=1 // pred_check
      _
    $region55: #{tpu_custom_call.1} parent=1 // pred_check_branch
      %120 = sbr.rel (0) target = $region57
    $region56: #{tpu_custom_call.1} parent=1 // pred_region
      %122 = dma.done [#allocation9], 6144
    $region57: #{tpu_custom_call.1} parent=1 // pred_fallthru
      _
    // Predicated region
    $region58: #{tpu_custom_call.1} parent=1 // pred_check
      _
    $region59: #{tpu_custom_call.1} parent=1 // pred_check_branch
      %124 = sbr.rel (0) target = $region61
    $region60: #{tpu_custom_call.1} parent=1 // pred_region
      %126 = dma.done [#allocation12], 2048
    $region61: #{tpu_custom_call.1} parent=1 // pred_fallthru
      _
    %v127 = vld [vmem:[#allocation2] sm:$0xff]
    %v128 = vld [vmem:[#allocation2 + $0x8] sm:$0xff]
    %v129 = vld [vmem:[#allocation2 + $0x10] sm:$0xff]
    %v130 = vld [vmem:[#allocation2 + $0x18] sm:$0xff]
    %v131 = vld [vmem:[#allocation7] sm:$0xff]
    %v132 = vld [vmem:[#allocation7 + $0x8] sm:$0xff]
    %v133 = vld [vmem:[#allocation7 + $0x10] sm:$0xff]
    %v134 = vld [vmem:[#allocation7 + $0x18] sm:$0xff]
    %v135 = vld [vmem:[#allocation7 + $0x20] sm:$0xff]
    %v136 = vld [vmem:[#allocation7 + $0x28] sm:$0xff]
    %v137 = vld [vmem:[#allocation7 + $0x30] sm:$0xff]
    %v138 = vld [vmem:[#allocation7 + $0x38] sm:$0xff]
    %v139 = vld [vmem:[#allocation7 + $0x40] sm:$0xff]
    %v140 = vld [vmem:[#allocation7 + $0x48] sm:$0xff]
    %v141 = vld [vmem:[#allocation7 + $0x50] sm:$0xff]
    %v142 = vld [vmem:[#allocation7 + $0x58] sm:$0xff]
    %v143 = vld [vmem:[#allocation7 + $0x60] sm:$0xff]
    %v144 = vld [vmem:[#allocation7 + $0x68] sm:$0xff]
    %v145 = vld [vmem:[#allocation7 + $0x70] sm:$0xff]
    %v146 = vld [vmem:[#allocation7 + $0x78] sm:$0xff]
    %v147 = vld [vmem:[#allocation7 + $0x80] sm:$0xff]
    %v148 = vld [vmem:[#allocation7 + $0x88] sm:$0xff]
    %v149 = vld [vmem:[#allocation7 + $0x90] sm:$0xff]
    %v150 = vld [vmem:[#allocation7 + $0x98] sm:$0xff]
    %v151 = vld [vmem:[#allocation7 + $0xa0] sm:$0xff]
    %v152 = vld [vmem:[#allocation7 + $0xa8] sm:$0xff]
    %v153 = vld [vmem:[#allocation7 + $0xb0] sm:$0xff]
    %v154 = vld [vmem:[#allocation7 + $0xb8] sm:$0xff]
    %v155 = vld [vmem:[#allocation7 + $0xc0] sm:$0xff]
    %v156 = vld [vmem:[#allocation7 + $0xc8] sm:$0xff]
    %v157 = vld [vmem:[#allocation7 + $0xd0] sm:$0xff]
    %v158 = vld [vmem:[#allocation7 + $0xd8] sm:$0xff]
    %v159 = vld [vmem:[#allocation7 + $0xe0] sm:$0xff]
    %v160 = vld [vmem:[#allocation7 + $0xe8] sm:$0xff]
    %v161 = vld [vmem:[#allocation7 + $0xf0] sm:$0xff]
    %v162 = vld [vmem:[#allocation7 + $0xf8] sm:$0xff]
    %v163 = vld [vmem:[#allocation7 + $0x100] sm:$0xff]
    %v164 = vld [vmem:[#allocation7 + $0x108] sm:$0xff]
    %v165 = vld [vmem:[#allocation7 + $0x110] sm:$0xff]
    %v166 = vld [vmem:[#allocation7 + $0x118] sm:$0xff]
    %v167 = vld [vmem:[#allocation7 + $0x120] sm:$0xff]
    %v168 = vld [vmem:[#allocation7 + $0x128] sm:$0xff]
    %v169 = vld [vmem:[#allocation7 + $0x130] sm:$0xff]
    %v170 = vld [vmem:[#allocation7 + $0x138] sm:$0xff]
    %v171 = vld [vmem:[#allocation7 + $0x140] sm:$0xff]
    %v172 = vld [vmem:[#allocation7 + $0x148] sm:$0xff]
    %v173 = vld [vmem:[#allocation7 + $0x150] sm:$0xff]
    %v174 = vld [vmem:[#allocation7 + $0x158] sm:$0xff]
    %v175 = vld [vmem:[#allocation7 + $0x160] sm:$0xff]
    %v176 = vld [vmem:[#allocation7 + $0x168] sm:$0xff]
    %v177 = vld [vmem:[#allocation7 + $0x170] sm:$0xff]
    %v178 = vld [vmem:[#allocation7 + $0x178] sm:$0xff]
    %v181 = vrot.slane %v128, 7
    %v182 = vrot.slane %v130, 7
    %vm187 = vcmask 1040384
    %v188 = vrot.slane %v127, 7
    %v189 = vsel %vm187, %v188, %v181
    %v190 = vrot.slane %v129, 7
    %v191 = vsel %vm187, %v190, %v182
    %v196 = vsel %vm187, %v181, %v188
    %v197 = vsel %vm187, %v182, %v190
    %vm200 = vcmask 1046528
    %v201 = vrot.slane %v196, 1
    %v202 = vrot.slane %v189, 1
    %v203 = vsel %vm200, %v201, %v202
    %v204 = vsel %vm200, %v202, %v201
    %v205 = vrot.slane %v197, 1
    %v206 = vrot.slane %v191, 1
    %v207 = vsel %vm200, %v205, %v206
    %v208 = vsel %vm200, %v206, %v205
    %vm213 = vcmask 1045504
    %v214 = vrot.slane %v196, 2
    %v215 = vrot.slane %v189, 2
    %v216 = vsel %vm213, %v214, %v215
    %v217 = vsel %vm213, %v215, %v214
    %v218 = vrot.slane %v197, 2
    %v219 = vrot.slane %v191, 2
    %v220 = vsel %vm213, %v218, %v219
    %v221 = vsel %vm213, %v219, %v218
    %226 = vmatpush.msra.mxu0 %v146
    %227 = vmatpush.msra.mxu0 %v145
    %228 = vmatpush.msra.mxu0 %v144
    %229 = vmatpush.msra.mxu0 %v143
    %230 = vmatpush.msra.mxu0 %v142
    %231 = vmatpush.msra.mxu0 %v141
    %232 = vmatpush.msra.mxu0 %v140
    %233 = vmatpush.msra.mxu0 %v139
    %234 = vmatpush.msra.mxu0 %v138
    %235 = vmatpush.msra.mxu0 %v137
    %236 = vmatpush.msra.mxu0 %v136
    %237 = vmatpush.msra.mxu0 %v135
    %238 = vmatpush.msra.mxu0 %v134
    %239 = vmatpush.msra.mxu0 %v133
    %240 = vmatpush.msra.mxu0 %v132
    %241 = vmatpush.msra.mxu0 %v131
    %242 = vmatmul.f32.gmra.mxu0 %v196
    %v243 = vpop.f32.mrf.mxu0
    %v244 = vadd.f32 0.0, %v243
    %245 = vmatmul.f32.gmra.mxu0 %v189
    %v246 = vpop.f32.mrf.mxu0
    %v247 = vadd.f32 0.0, %v246
    %248 = vmatmul.f32.gmra.mxu0 %v197
    %v249 = vpop.f32.mrf.mxu0
    %v250 = vadd.f32 0.0, %v249
    %251 = vmatmul.f32.gmra.mxu0 %v191
    %v252 = vpop.f32.mrf.mxu0
    %v253 = vadd.f32 0.0, %v252
    %254 = vdwg.mxu0
    %255 = vmatpush.msra.mxu0 %v162
    %256 = vmatpush.msra.mxu0 %v161
    %257 = vmatpush.msra.mxu0 %v160
    %258 = vmatpush.msra.mxu0 %v159
    %259 = vmatpush.msra.mxu0 %v158
    %260 = vmatpush.msra.mxu0 %v157
    %261 = vmatpush.msra.mxu0 %v156
    %262 = vmatpush.msra.mxu0 %v155
    %263 = vmatpush.msra.mxu0 %v154
    %264 = vmatpush.msra.mxu0 %v153
    %265 = vmatpush.msra.mxu0 %v152
    %266 = vmatpush.msra.mxu0 %v151
    %267 = vmatpush.msra.mxu0 %v150
    %268 = vmatpush.msra.mxu0 %v149
    %269 = vmatpush.msra.mxu0 %v148
    %270 = vmatpush.msra.mxu0 %v147
    %271 = vmatmul.f32.gmra.mxu0 %v203
    %v272 = vpop.f32.mrf.mxu0
    %v273 = vadd.f32 %v244, %v272
    %274 = vmatmul.f32.gmra.mxu0 %v204
    %v275 = vpop.f32.mrf.mxu0
    %v276 = vadd.f32 %v247, %v275
    %277 = vmatmul.f32.gmra.mxu0 %v207
    %v278 = vpop.f32.mrf.mxu0
    %v279 = vadd.f32 %v250, %v278
    %280 = vmatmul.f32.gmra.mxu0 %v208
    %v281 = vpop.f32.mrf.mxu0
    %v282 = vadd.f32 %v253, %v281
    %283 = vdwg.mxu0
    %284 = vmatpush.msra.mxu0 %v178
    %285 = vmatpush.msra.mxu0 %v177
    %286 = vmatpush.msra.mxu0 %v176
    %287 = vmatpush.msra.mxu0 %v175
    %288 = vmatpush.msra.mxu0 %v174
    %289 = vmatpush.msra.mxu0 %v173
    %290 = vmatpush.msra.mxu0 %v172
    %291 = vmatpush.msra.mxu0 %v171
    %292 = vmatpush.msra.mxu0 %v170
    %293 = vmatpush.msra.mxu0 %v169
    %294 = vmatpush.msra.mxu0 %v168
    %295 = vmatpush.msra.mxu0 %v167
    %296 = vmatpush.msra.mxu0 %v166
    %297 = vmatpush.msra.mxu0 %v165
    %298 = vmatpush.msra.mxu0 %v164
    %299 = vmatpush.msra.mxu0 %v163
    %300 = vmatmul.f32.gmra.mxu0 %v216
    %v301 = vpop.f32.mrf.mxu0
    %v302 = vadd.f32 %v273, %v301
    %303 = vmatmul.f32.gmra.mxu0 %v217
    %v304 = vpop.f32.mrf.mxu0
    %v305 = vadd.f32 %v276, %v304
    %306 = vmatmul.f32.gmra.mxu0 %v220
    %v307 = vpop.f32.mrf.mxu0
    %v308 = vadd.f32 %v279, %v307
    %309 = vmatmul.f32.gmra.mxu0 %v221
    %v310 = vpop.f32.mrf.mxu0
    %v311 = vadd.f32 %v282, %v310
    %312 = vdwg.mxu0
    %v313 = vld [vmem:[#allocation5] sm:$0xff]
    %v314 = vld [vmem:[#allocation5 + $0x8] sm:$0xff]
    %v315 = vadd.f32 %v302, %v313
    %v316 = vadd.f32 %v305, %v314
    %v317 = vadd.f32 %v308, %v313
    %v318 = vadd.f32 %v311, %v314
    %v319 = vld [vmem:[#allocation8] sm:$0xff]
    %v320 = vld [vmem:[#allocation8 + $0x8] sm:$0xff]
    %v321 = vld [vmem:[#allocation8 + $0x10] sm:$0xff]
    %v322 = vld [vmem:[#allocation8 + $0x18] sm:$0xff]
    %v323 = vld [vmem:[#allocation8 + $0x20] sm:$0xff]
    %v324 = vld [vmem:[#allocation8 + $0x28] sm:$0xff]
    %v325 = vld [vmem:[#allocation8 + $0x30] sm:$0xff]
    %v326 = vld [vmem:[#allocation8 + $0x38] sm:$0xff]
    %v327 = vld [vmem:[#allocation8 + $0x40] sm:$0xff]
    %v328 = vld [vmem:[#allocation8 + $0x48] sm:$0xff]
    %v329 = vld [vmem:[#allocation8 + $0x50] sm:$0xff]
    %v330 = vld [vmem:[#allocation8 + $0x58] sm:$0xff]
    %v331 = vld [vmem:[#allocation8 + $0x60] sm:$0xff]
    %v332 = vld [vmem:[#allocation8 + $0x68] sm:$0xff]
    %v333 = vld [vmem:[#allocation8 + $0x70] sm:$0xff]
    %v334 = vld [vmem:[#allocation8 + $0x78] sm:$0xff]
    %v335 = vld [vmem:[#allocation8 + $0x80] sm:$0xff]
    %v336 = vld [vmem:[#allocation8 + $0x88] sm:$0xff]
    %v337 = vld [vmem:[#allocation8 + $0x90] sm:$0xff]
    %v338 = vld [vmem:[#allocation8 + $0x98] sm:$0xff]
    %v339 = vld [vmem:[#allocation8 + $0xa0] sm:$0xff]
    %v340 = vld [vmem:[#allocation8 + $0xa8] sm:$0xff]
    %v341 = vld [vmem:[#allocation8 + $0xb0] sm:$0xff]
    %v342 = vld [vmem:[#allocation8 + $0xb8] sm:$0xff]
    %v343 = vld [vmem:[#allocation8 + $0xc0] sm:$0xff]
    %v344 = vld [vmem:[#allocation8 + $0xc8] sm:$0xff]
    %v345 = vld [vmem:[#allocation8 + $0xd0] sm:$0xff]
    %v346 = vld [vmem:[#allocation8 + $0xd8] sm:$0xff]
    %v347 = vld [vmem:[#allocation8 + $0xe0] sm:$0xff]
    %v348 = vld [vmem:[#allocation8 + $0xe8] sm:$0xff]
    %v349 = vld [vmem:[#allocation8 + $0xf0] sm:$0xff]
    %v350 = vld [vmem:[#allocation8 + $0xf8] sm:$0xff]
    %v351 = vld [vmem:[#allocation8 + $0x100] sm:$0xff]
    %v352 = vld [vmem:[#allocation8 + $0x108] sm:$0xff]
    %v353 = vld [vmem:[#allocation8 + $0x110] sm:$0xff]
    %v354 = vld [vmem:[#allocation8 + $0x118] sm:$0xff]
    %v355 = vld [vmem:[#allocation8 + $0x120] sm:$0xff]
    %v356 = vld [vmem:[#allocation8 + $0x128] sm:$0xff]
    %v357 = vld [vmem:[#allocation8 + $0x130] sm:$0xff]
    %v358 = vld [vmem:[#allocation8 + $0x138] sm:$0xff]
    %v359 = vld [vmem:[#allocation8 + $0x140] sm:$0xff]
    %v360 = vld [vmem:[#allocation8 + $0x148] sm:$0xff]
    %v361 = vld [vmem:[#allocation8 + $0x150] sm:$0xff]
    %v362 = vld [vmem:[#allocation8 + $0x158] sm:$0xff]
    %v363 = vld [vmem:[#allocation8 + $0x160] sm:$0xff]
    %v364 = vld [vmem:[#allocation8 + $0x168] sm:$0xff]
    %v365 = vld [vmem:[#allocation8 + $0x170] sm:$0xff]
    %v366 = vld [vmem:[#allocation8 + $0x178] sm:$0xff]
    %v371 = vrot.slane %v315, 7
    %v372 = vrot.slane %v316, 7
    %v373 = vsel %vm187, %v371, %v372
    %v374 = vrot.slane %v317, 7
    %v375 = vrot.slane %v318, 7
    %v376 = vsel %vm187, %v374, %v375
    %v383 = vsel %vm187, 0.0, %v371
    %v384 = vsel %vm187, 0.0, %v374
    %v385 = vsel %vm187, %v372, 0.0
    %v386 = vsel %vm187, %v375, 0.0
    %v391 = vrot.slane %v383, 1
    %v392 = vrot.slane %v373, 1
    %v393 = vsel %vm200, %v391, %v392
    %v394 = vrot.slane %v385, 1
    %v395 = vsel %vm200, %v392, %v394
    %v396 = vrot.slane %v384, 1
    %v397 = vrot.slane %v376, 1
    %v398 = vsel %vm200, %v396, %v397
    %v399 = vrot.slane %v386, 1
    %v400 = vsel %vm200, %v397, %v399
    %v405 = vrot.slane %v383, 2
    %v406 = vrot.slane %v373, 2
    %v407 = vsel %vm213, %v405, %v406
    %v408 = vrot.slane %v385, 2
    %v409 = vsel %vm213, %v406, %v408
    %v410 = vrot.slane %v384, 2
    %v411 = vrot.slane %v376, 2
    %v412 = vsel %vm213, %v410, %v411
    %v413 = vrot.slane %v386, 2
    %v414 = vsel %vm213, %v411, %v413
    %419 = vmatpush.msra.mxu0 %v334
    %420 = vmatpush.msra.mxu0 %v333
    %421 = vmatpush.msra.mxu0 %v332
    %422 = vmatpush.msra.mxu0 %v331
    %423 = vmatpush.msra.mxu0 %v330
    %424 = vmatpush.msra.mxu0 %v329
    %425 = vmatpush.msra.mxu0 %v328
    %426 = vmatpush.msra.mxu0 %v327
    %427 = vmatpush.msra.mxu0 %v326
    %428 = vmatpush.msra.mxu0 %v325
    %429 = vmatpush.msra.mxu0 %v324
    %430 = vmatpush.msra.mxu0 %v323
    %431 = vmatpush.msra.mxu0 %v322
    %432 = vmatpush.msra.mxu0 %v321
    %433 = vmatpush.msra.mxu0 %v320
    %434 = vmatpush.msra.mxu0 %v319
    %435 = vmatmul.f32.gmra.mxu0 %v383
    %v436 = vpop.f32.mrf.mxu0
    %v437 = vadd.f32 0.0, %v436
    %438 = vmatmul.f32.gmra.mxu0 %v373
    %v439 = vpop.f32.mrf.mxu0
    %v440 = vadd.f32 0.0, %v439
    %441 = vmatmul.f32.gmra.mxu0 %v384
    %v442 = vpop.f32.mrf.mxu0
    %v443 = vadd.f32 0.0, %v442
    %444 = vmatmul.f32.gmra.mxu0 %v376
    %v445 = vpop.f32.mrf.mxu0
    %v446 = vadd.f32 0.0, %v445
    %447 = vdwg.mxu0
    %448 = vmatpush.msra.mxu0 %v350
    %449 = vmatpush.msra.mxu0 %v349
    %450 = vmatpush.msra.mxu0 %v348
    %451 = vmatpush.msra.mxu0 %v347
    %452 = vmatpush.msra.mxu0 %v346
    %453 = vmatpush.msra.mxu0 %v345
    %454 = vmatpush.msra.mxu0 %v344
    %455 = vmatpush.msra.mxu0 %v343
    %456 = vmatpush.msra.mxu0 %v342
    %457 = vmatpush.msra.mxu0 %v341
    %458 = vmatpush.msra.mxu0 %v340
    %459 = vmatpush.msra.mxu0 %v339
    %460 = vmatpush.msra.mxu0 %v338
    %461 = vmatpush.msra.mxu0 %v337
    %462 = vmatpush.msra.mxu0 %v336
    %463 = vmatpush.msra.mxu0 %v335
    %464 = vmatmul.f32.gmra.mxu0 %v393
    %v465 = vpop.f32.mrf.mxu0
    %v466 = vadd.f32 %v437, %v465
    %467 = vmatmul.f32.gmra.mxu0 %v395
    %v468 = vpop.f32.mrf.mxu0
    %v469 = vadd.f32 %v440, %v468
    %470 = vmatmul.f32.gmra.mxu0 %v398
    %v471 = vpop.f32.mrf.mxu0
    %v472 = vadd.f32 %v443, %v471
    %473 = vmatmul.f32.gmra.mxu0 %v400
    %v474 = vpop.f32.mrf.mxu0
    %v475 = vadd.f32 %v446, %v474
    %476 = vdwg.mxu0
    %477 = vmatpush.msra.mxu0 %v366
    %478 = vmatpush.msra.mxu0 %v365
    %479 = vmatpush.msra.mxu0 %v364
    %480 = vmatpush.msra.mxu0 %v363
    %481 = vmatpush.msra.mxu0 %v362
    %482 = vmatpush.msra.mxu0 %v361
    %483 = vmatpush.msra.mxu0 %v360
    %484 = vmatpush.msra.mxu0 %v359
    %485 = vmatpush.msra.mxu0 %v358
    %486 = vmatpush.msra.mxu0 %v357
    %487 = vmatpush.msra.mxu0 %v356
    %488 = vmatpush.msra.mxu0 %v355
    %489 = vmatpush.msra.mxu0 %v354
    %490 = vmatpush.msra.mxu0 %v353
    %491 = vmatpush.msra.mxu0 %v352
    %492 = vmatpush.msra.mxu0 %v351
    %493 = vmatmul.f32.gmra.mxu0 %v407
    %v494 = vpop.f32.mrf.mxu0
    %v495 = vadd.f32 %v466, %v494
    %496 = vmatmul.f32.gmra.mxu0 %v409
    %v497 = vpop.f32.mrf.mxu0
    %v498 = vadd.f32 %v469, %v497
    %499 = vmatmul.f32.gmra.mxu0 %v412
    %v500 = vpop.f32.mrf.mxu0
    %v501 = vadd.f32 %v472, %v500
    %502 = vmatmul.f32.gmra.mxu0 %v414
    %v503 = vpop.f32.mrf.mxu0
    %v504 = vadd.f32 %v475, %v503
    %505 = vdwg.mxu0
    %v506 = vld [vmem:[%s4] sm:$0x1]
    %v508 = vperm.slane %v506, 0
    %v510 = vadd.f32 %v495, %v508
    %v511 = vadd.f32 %v498, %v508
    %v512 = vadd.f32 %v501, %v508
    %v513 = vadd.f32 %v504, %v508
    %vm514 = vcmp.gt.f32.partialorder %v510, 0.0
    %vm515 = vcmp.gt.f32.partialorder %v511, 0.0
    %vm516 = vcmp.gt.f32.partialorder %v512, 0.0
    %vm517 = vcmp.gt.f32.partialorder %v513, 0.0
    %v518 = vmin.f32 %v510, 0.0
    %v519 = vmin.f32 %v511, 0.0
    %v520 = vmin.f32 %v512, 0.0
    %v521 = vmin.f32 %v513, 0.0
    %v522 = vmul.f32 %v518, 1.442695
    %v523 = vpow.pop %v522
    %v524 = vmul.f32 %v519, 1.442695
    %v525 = vpow.pop %v524
    %v526 = vmul.f32 %v520, 1.442695
    %v527 = vpow.pop %v526
    %v528 = vmul.f32 %v521, 1.442695
    %v529 = vpow.pop %v528
    %v530 = vsub.f32 %v523, 1.0
    %v531 = vsub.f32 %v525, 1.0
    %v532 = vsub.f32 %v527, 1.0
    %v533 = vsub.f32 %v529, 1.0
    %v534 = vsel %vm514, %v510, %v530
    %v535 = vsel %vm515, %v511, %v531
    %v536 = vsel %vm516, %v512, %v532
    %v537 = vsel %vm517, %v513, %v533
    %v538 = vld [vmem:[#allocation10] sm:$0xff]
    %v539 = vld [vmem:[#allocation10 + $0x8] sm:$0xff]
    %v540 = vld [vmem:[#allocation10 + $0x10] sm:$0xff]
    %v541 = vld [vmem:[#allocation10 + $0x18] sm:$0xff]
    %v542 = vld [vmem:[#allocation10 + $0x20] sm:$0xff]
    %v543 = vld [vmem:[#allocation10 + $0x28] sm:$0xff]
    %v544 = vld [vmem:[#allocation10 + $0x30] sm:$0xff]
    %v545 = vld [vmem:[#allocation10 + $0x38] sm:$0xff]
    %v546 = vld [vmem:[#allocation10 + $0x40] sm:$0xff]
    %v547 = vld [vmem:[#allocation10 + $0x48] sm:$0xff]
    %v548 = vld [vmem:[#allocation10 + $0x50] sm:$0xff]
    %v549 = vld [vmem:[#allocation10 + $0x58] sm:$0xff]
    %v550 = vld [vmem:[#allocation10 + $0x60] sm:$0xff]
    %v551 = vld [vmem:[#allocation10 + $0x68] sm:$0xff]
    %v552 = vld [vmem:[#allocation10 + $0x70] sm:$0xff]
    %v553 = vld [vmem:[#allocation10 + $0x78] sm:$0xff]
    %v554 = vld [vmem:[#allocation10 + $0x80] sm:$0xff]
    %v555 = vld [vmem:[#allocation10 + $0x88] sm:$0xff]
    %v556 = vld [vmem:[#allocation10 + $0x90] sm:$0xff]
    %v557 = vld [vmem:[#allocation10 + $0x98] sm:$0xff]
    %v558 = vld [vmem:[#allocation10 + $0xa0] sm:$0xff]
    %v559 = vld [vmem:[#allocation10 + $0xa8] sm:$0xff]
    %v560 = vld [vmem:[#allocation10 + $0xb0] sm:$0xff]
    %v561 = vld [vmem:[#allocation10 + $0xb8] sm:$0xff]
    %v562 = vld [vmem:[#allocation10 + $0xc0] sm:$0xff]
    %v563 = vld [vmem:[#allocation10 + $0xc8] sm:$0xff]
    %v564 = vld [vmem:[#allocation10 + $0xd0] sm:$0xff]
    %v565 = vld [vmem:[#allocation10 + $0xd8] sm:$0xff]
    %v566 = vld [vmem:[#allocation10 + $0xe0] sm:$0xff]
    %v567 = vld [vmem:[#allocation10 + $0xe8] sm:$0xff]
    %v568 = vld [vmem:[#allocation10 + $0xf0] sm:$0xff]
    %v569 = vld [vmem:[#allocation10 + $0xf8] sm:$0xff]
    %v570 = vld [vmem:[#allocation10 + $0x100] sm:$0xff]
    %v571 = vld [vmem:[#allocation10 + $0x108] sm:$0xff]
    %v572 = vld [vmem:[#allocation10 + $0x110] sm:$0xff]
    %v573 = vld [vmem:[#allocation10 + $0x118] sm:$0xff]
    %v574 = vld [vmem:[#allocation10 + $0x120] sm:$0xff]
    %v575 = vld [vmem:[#allocation10 + $0x128] sm:$0xff]
    %v576 = vld [vmem:[#allocation10 + $0x130] sm:$0xff]
    %v577 = vld [vmem:[#allocation10 + $0x138] sm:$0xff]
    %v578 = vld [vmem:[#allocation10 + $0x140] sm:$0xff]
    %v579 = vld [vmem:[#allocation10 + $0x148] sm:$0xff]
    %v580 = vld [vmem:[#allocation10 + $0x150] sm:$0xff]
    %v581 = vld [vmem:[#allocation10 + $0x158] sm:$0xff]
    %v582 = vld [vmem:[#allocation10 + $0x160] sm:$0xff]
    %v583 = vld [vmem:[#allocation10 + $0x168] sm:$0xff]
    %v584 = vld [vmem:[#allocation10 + $0x170] sm:$0xff]
    %v585 = vld [vmem:[#allocation10 + $0x178] sm:$0xff]
    %v590 = vrot.slane %v534, 7
    %v591 = vrot.slane %v535, 7
    %v592 = vsel %vm187, %v590, %v591
    %v593 = vrot.slane %v536, 7
    %v594 = vrot.slane %v537, 7
    %v595 = vsel %vm187, %v593, %v594
    %v602 = vsel %vm187, 0.0, %v590
    %v603 = vsel %vm187, 0.0, %v593
    %v604 = vsel %vm187, %v591, 0.0
    %v605 = vsel %vm187, %v594, 0.0
    %v610 = vrot.slane %v602, 1
    %v611 = vrot.slane %v592, 1
    %v612 = vsel %vm200, %v610, %v611
    %v613 = vrot.slane %v604, 1
    %v614 = vsel %vm200, %v611, %v613
    %v615 = vrot.slane %v603, 1
    %v616 = vrot.slane %v595, 1
    %v617 = vsel %vm200, %v615, %v616
    %v618 = vrot.slane %v605, 1
    %v619 = vsel %vm200, %v616, %v618
    %v624 = vrot.slane %v602, 2
    %v625 = vrot.slane %v592, 2
    %v626 = vsel %vm213, %v624, %v625
    %v627 = vrot.slane %v604, 2
    %v628 = vsel %vm213, %v625, %v627
    %v629 = vrot.slane %v603, 2
    %v630 = vrot.slane %v595, 2
    %v631 = vsel %vm213, %v629, %v630
    %v632 = vrot.slane %v605, 2
    %v633 = vsel %vm213, %v630, %v632
    %638 = vmatpush.msra.mxu0 %v553
    %639 = vmatpush.msra.mxu0 %v552
    %640 = vmatpush.msra.mxu0 %v551
    %641 = vmatpush.msra.mxu0 %v550
    %642 = vmatpush.msra.mxu0 %v549
    %643 = vmatpush.msra.mxu0 %v548
    %644 = vmatpush.msra.mxu0 %v547
    %645 = vmatpush.msra.mxu0 %v546
    %646 = vmatpush.msra.mxu0 %v545
    %647 = vmatpush.msra.mxu0 %v544
    %648 = vmatpush.msra.mxu0 %v543
    %649 = vmatpush.msra.mxu0 %v542
    %650 = vmatpush.msra.mxu0 %v541
    %651 = vmatpush.msra.mxu0 %v540
    %652 = vmatpush.msra.mxu0 %v539
    %653 = vmatpush.msra.mxu0 %v538
    %654 = vmatmul.f32.gmra.mxu0 %v602
    %v655 = vpop.f32.mrf.mxu0
    %v656 = vadd.f32 0.0, %v655
    %657 = vmatmul.f32.gmra.mxu0 %v592
    %v658 = vpop.f32.mrf.mxu0
    %v659 = vadd.f32 0.0, %v658
    %660 = vmatmul.f32.gmra.mxu0 %v603
    %v661 = vpop.f32.mrf.mxu0
    %v662 = vadd.f32 0.0, %v661
    %663 = vmatmul.f32.gmra.mxu0 %v595
    %v664 = vpop.f32.mrf.mxu0
    %v665 = vadd.f32 0.0, %v664
    %666 = vdwg.mxu0
    %667 = vmatpush.msra.mxu0 %v569
    %668 = vmatpush.msra.mxu0 %v568
    %669 = vmatpush.msra.mxu0 %v567
    %670 = vmatpush.msra.mxu0 %v566
    %671 = vmatpush.msra.mxu0 %v565
    %672 = vmatpush.msra.mxu0 %v564
    %673 = vmatpush.msra.mxu0 %v563
    %674 = vmatpush.msra.mxu0 %v562
    %675 = vmatpush.msra.mxu0 %v561
    %676 = vmatpush.msra.mxu0 %v560
    %677 = vmatpush.msra.mxu0 %v559
    %678 = vmatpush.msra.mxu0 %v558
    %679 = vmatpush.msra.mxu0 %v557
    %680 = vmatpush.msra.mxu0 %v556
    %681 = vmatpush.msra.mxu0 %v555
    %682 = vmatpush.msra.mxu0 %v554
    %683 = vmatmul.f32.gmra.mxu0 %v612
    %v684 = vpop.f32.mrf.mxu0
    %v685 = vadd.f32 %v656, %v684
    %686 = vmatmul.f32.gmra.mxu0 %v614
    %v687 = vpop.f32.mrf.mxu0
    %v688 = vadd.f32 %v659, %v687
    %689 = vmatmul.f32.gmra.mxu0 %v617
    %v690 = vpop.f32.mrf.mxu0
    %v691 = vadd.f32 %v662, %v690
    %692 = vmatmul.f32.gmra.mxu0 %v619
    %v693 = vpop.f32.mrf.mxu0
    %v694 = vadd.f32 %v665, %v693
    %695 = vdwg.mxu0
    %696 = vmatpush.msra.mxu0 %v585
    %697 = vmatpush.msra.mxu0 %v584
    %698 = vmatpush.msra.mxu0 %v583
    %699 = vmatpush.msra.mxu0 %v582
    %700 = vmatpush.msra.mxu0 %v581
    %701 = vmatpush.msra.mxu0 %v580
    %702 = vmatpush.msra.mxu0 %v579
    %703 = vmatpush.msra.mxu0 %v578
    %704 = vmatpush.msra.mxu0 %v577
    %705 = vmatpush.msra.mxu0 %v576
    %706 = vmatpush.msra.mxu0 %v575
    %707 = vmatpush.msra.mxu0 %v574
    %708 = vmatpush.msra.mxu0 %v573
    %709 = vmatpush.msra.mxu0 %v572
    %710 = vmatpush.msra.mxu0 %v571
    %711 = vmatpush.msra.mxu0 %v570
    %712 = vmatmul.f32.gmra.mxu0 %v626
    %v713 = vpop.f32.mrf.mxu0
    %v714 = vadd.f32 %v685, %v713
    %715 = vmatmul.f32.gmra.mxu0 %v628
    %v716 = vpop.f32.mrf.mxu0
    %v717 = vadd.f32 %v688, %v716
    %718 = vmatmul.f32.gmra.mxu0 %v631
    %v719 = vpop.f32.mrf.mxu0
    %v720 = vadd.f32 %v691, %v719
    %721 = vmatmul.f32.gmra.mxu0 %v633
    %v722 = vpop.f32.mrf.mxu0
    %v723 = vadd.f32 %v694, %v722
    %724 = vdwg.mxu0
    %v725 = vld [vmem:[%s6] sm:$0x1]
    %v727 = vperm.slane %v725, 0
    %v729 = vadd.f32 %v714, %v727
    %v730 = vadd.f32 %v717, %v727
    %v731 = vadd.f32 %v720, %v727
    %v732 = vadd.f32 %v723, %v727
    %vm733 = vcmp.gt.f32.partialorder %v729, 0.0
    %vm734 = vcmp.gt.f32.partialorder %v730, 0.0
    %vm735 = vcmp.gt.f32.partialorder %v731, 0.0
    %vm736 = vcmp.gt.f32.partialorder %v732, 0.0
    %v737 = vmin.f32 %v729, 0.0
    %v738 = vmin.f32 %v730, 0.0
    %v739 = vmin.f32 %v731, 0.0
    %v740 = vmin.f32 %v732, 0.0
    %v741 = vmul.f32 %v737, 1.442695
    %v742 = vpow.pop %v741
    %v743 = vmul.f32 %v738, 1.442695
    %v744 = vpow.pop %v743
    %v745 = vmul.f32 %v739, 1.442695
    %v746 = vpow.pop %v745
    %v747 = vmul.f32 %v740, 1.442695
    %v748 = vpow.pop %v747
    %v749 = vsub.f32 %v742, 1.0
    %v750 = vsub.f32 %v744, 1.0
    %v751 = vsub.f32 %v746, 1.0
    %v752 = vsub.f32 %v748, 1.0
    %v753 = vsel %vm733, %v729, %v749
    %v754 = vsel %vm734, %v730, %v750
    %v755 = vsel %vm735, %v731, %v751
    %v756 = vsel %vm736, %v732, %v752
    %v757 = vld [vmem:[#allocation11] sm:$0xff]
    %v758 = vld [vmem:[#allocation11 + $0x8] sm:$0xff]
    %v759 = vld [vmem:[#allocation11 + $0x10] sm:$0xff]
    %v760 = vld [vmem:[#allocation11 + $0x18] sm:$0xff]
    %v761 = vld [vmem:[#allocation11 + $0x20] sm:$0xff]
    %v762 = vld [vmem:[#allocation11 + $0x28] sm:$0xff]
    %v763 = vld [vmem:[#allocation11 + $0x30] sm:$0xff]
    %v764 = vld [vmem:[#allocation11 + $0x38] sm:$0xff]
    %v765 = vld [vmem:[#allocation11 + $0x40] sm:$0xff]
    %v766 = vld [vmem:[#allocation11 + $0x48] sm:$0xff]
    %v767 = vld [vmem:[#allocation11 + $0x50] sm:$0xff]
    %v768 = vld [vmem:[#allocation11 + $0x58] sm:$0xff]
    %v769 = vld [vmem:[#allocation11 + $0x60] sm:$0xff]
    %v770 = vld [vmem:[#allocation11 + $0x68] sm:$0xff]
    %v771 = vld [vmem:[#allocation11 + $0x70] sm:$0xff]
    %v772 = vld [vmem:[#allocation11 + $0x78] sm:$0xff]
    %773 = vmatpush.msra.mxu0 %v772
    %774 = vmatpush.msra.mxu0 %v771
    %775 = vmatpush.msra.mxu0 %v770
    %776 = vmatpush.msra.mxu0 %v769
    %777 = vmatpush.msra.mxu0 %v768
    %778 = vmatpush.msra.mxu0 %v767
    %779 = vmatpush.msra.mxu0 %v766
    %780 = vmatpush.msra.mxu0 %v765
    %781 = vmatpush.msra.mxu0 %v764
    %782 = vmatpush.msra.mxu0 %v763
    %783 = vmatpush.msra.mxu0 %v762
    %784 = vmatpush.msra.mxu0 %v761
    %785 = vmatpush.msra.mxu0 %v760
    %786 = vmatpush.msra.mxu0 %v759
    %787 = vmatpush.msra.mxu0 %v758
    %788 = vmatpush.msra.mxu0 %v757
    %789 = vmatmul.f32.gmra.mxu0 %v753
    %v790 = vpop.f32.mrf.mxu0
    %v791 = vadd.f32 0.0, %v790
    %792 = vmatmul.f32.gmra.mxu0 %v754
    %v793 = vpop.f32.mrf.mxu0
    %v794 = vadd.f32 0.0, %v793
    %795 = vmatmul.f32.gmra.mxu0 %v755
    %v796 = vpop.f32.mrf.mxu0
    %v797 = vadd.f32 0.0, %v796
    %798 = vmatmul.f32.gmra.mxu0 %v756
    %v799 = vpop.f32.mrf.mxu0
    %v800 = vadd.f32 0.0, %v799
    %801 = vdwg.mxu0
    %v802 = vld [vmem:[%s8] sm:$0x1]
    %v804 = vperm.slane %v802, 0
    %v806 = vadd.f32 %v791, %v804
    %v807 = vadd.f32 %v794, %v804
    %v808 = vadd.f32 %v797, %v804
    %v809 = vadd.f32 %v800, %v804
    %810 = vst [vmem:[#allocation13] sm:$0xff] %v806
    %811 = vst [vmem:[#allocation13 + $0x8] sm:$0xff] %v807
    %812 = vst [vmem:[#allocation13 + $0x10] sm:$0xff] %v808
    %813 = vst [vmem:[#allocation13 + $0x18] sm:$0xff] %v809
    // Predicated region
    $region62: #{tpu_custom_call.1} parent=1 // pred_check
      _
    $region63: #{tpu_custom_call.1} parent=1 // pred_check_branch
      %815 = sbr.rel (0) target = $region65
    $region64: #{tpu_custom_call.1} parent=1 // pred_region
      %817 = vsyncadd [#allocation4], 0
      %s818 = sshll.u32 [#allocation13], 4
      %s819 = int_to_ptr.vmem [resolvable:$true] %s818
      %s820 = sshll.u32 %s9, 4
      %s821 = int_to_ptr.hbm [resolvable:$true] %s820
      %826 = dma.vmem_to_hbm [thread:$0]  %s819, 512, %s821, [#allocation4], 128, 128, 8
    $region65: #{tpu_custom_call.1} parent=1 // pred_fallthru
      _
    // Predicated region
    $region66: #{tpu_custom_call.1} parent=1 // pred_check
      _
    $region67: #{tpu_custom_call.1} parent=1 // pred_check_branch
      %828 = sbr.rel (0) target = $region69
    $region68: #{tpu_custom_call.1} parent=1 // pred_region
      %830 = dma.done [#allocation4], 512
    $region69: #{tpu_custom_call.1} parent=1 // pred_fallthru
      _
    %831 = vsyncpa [#allocation3], 1
    %832 = vsyncpa [#allocation6], 1
    %833 = vsyncpa [#allocation9], 1
    %834 = vsyncpa [#allocation12], 1
    %835 = vsyncpa [#allocation4], 1

// kernel: tpu_custom_call.1
$region0: #{tpu_custom_call.1}
  #allocation0 [shape = 'u32[]', space=smem, size = 0x4, offset = 0x4, fixed_abs, tag = 'smem constant byte address 0x4 - core index']
  #allocation1 [shape = 'u32[72,128]{1,0:T(1,128)}', space=vmem, size = 0x9000, scoped, tag = 'internal scratch']
  %s0 = inlined_call_operand.hbm [shape: f32[2,16,128], index: 0, kind: input, shape index: {}]
  %s1 = inlined_call_operand.hbm [shape: f32[16,128], index: 1, kind: input, shape index: {}]
  %s2 = inlined_call_operand.hbm [shape: f32[384,128], index: 2, kind: input, shape index: {}]
  %s3 = inlined_call_operand.hbm [shape: f32[384,128], index: 3, kind: input, shape index: {}]
  %s4 = inlined_call_operand.vmem [shape: f32[1,128], index: 4, kind: input, shape index: {}]
  %s5 = inlined_call_operand.hbm [shape: f32[384,128], index: 5, kind: input, shape index: {}]
  %s6 = inlined_call_operand.vmem [shape: f32[1,128], index: 6, kind: input, shape index: {}]
  %s7 = inlined_call_operand.hbm [shape: f32[128,128], index: 7, kind: input, shape index: {}]
  %s8 = inlined_call_operand.vmem [shape: f32[1,128], index: 8, kind: input, shape index: {}]
  %s9 = inlined_call_operand.hbm [shape: f32[2,16,128], index: 9, kind: output, shape index: {}]
  %s10 = sld [smem:[#allocation0]]
  $region70: #{tpu_custom_call.1} parent=0
    _
  %s12 = ssub.s32 1, %s10
  %s13 = scalar_select 0, %s12, %s10
  $region1: #{tpu_custom_call.1} parent=0
    #allocation2 [shape = 'u8[16384]{0}', space=vmem, size = 0x4000, scoped, tag = 'input window, operand 0, single buffered']
    #allocation3 [shape = 's32[1]{0}', space=sflag, size = 0x4, scoped, tag = 'scoped memory for tpu_custom_call.1']
    #allocation4 [shape = 's32[1]{0}', space=sflag, size = 0x4, scoped, tag = 'scoped memory for tpu_custom_call.1']
    #allocation5 [shape = 'u8[8192]{0}', space=vmem, size = 0x2000, scoped, tag = 'input window, operand 1, single buffered']
    #allocation6 [shape = 's32[1]{0}', space=sflag, size = 0x4, scoped, tag = 'scoped memory for tpu_custom_call.1']
    #allocation7 [shape = 'u8[196608]{0}', space=vmem, size = 0x30000, scoped, tag = 'input window, operand 2, single buffered']
    #allocation8 [shape = 'u8[196608]{0}', space=vmem, size = 0x30000, scoped, tag = 'input window, operand 3, single buffered']
    #allocation9 [shape = 's32[1]{0}', space=sflag, size = 0x4, scoped, tag = 'scoped memory for tpu_custom_call.1']
    #allocation10 [shape = 'u8[196608]{0}', space=vmem, size = 0x30000, scoped, tag = 'input window, operand 5, single buffered']
    #allocation11 [shape = 'u8[65536]{0}', space=vmem, size = 0x10000, scoped, tag = 'input window, operand 7, single buffered']
    #allocation12 [shape = 's32[1]{0}', space=sflag, size = 0x4, scoped, tag = 'scoped memory for tpu_custom_call.1']
    #allocation13 [shape = 'u8[16384]{0}', space=vmem, size = 0x4000, scoped, tag = 'output window, operand 0, single buffered']
    %14 = vsyncpa [#allocation3], 0
    %15 = vsyncpa [#allocation6], 0
    %16 = vsyncpa [#allocation9], 0
    %17 = vsyncpa [#allocation12], 0
    %18 = vsyncpa [#allocation4], 0
    // Predicated region
    $region2: #{tpu_custom_call.1} parent=1 // pred_check
      _
    $region3: #{tpu_custom_call.1} parent=1 // pred_check_branch
      %20 = sbr.rel (0) target = $region5
    $region4: #{tpu_custom_call.1} parent=1 // pred_region
      %22 = vsyncadd [#allocation3], 0
      %s23 = sshll.u32 %s0, 4
      %s24 = int_to_ptr.hbm [resolvable:$true] %s23
      %s25 = sshll.u32 [#allocation2], 4
      %s26 = int_to_ptr.vmem [resolvable:$true] %s25
      %31 = dma.hbm_to_vmem [thread:$0]  %s24, 512, %s26, [#allocation3], 128, 128, 8
    $region5: #{tpu_custom_call.1} parent=1 // pred_fallthru
      _
    // Predicated region
    $region6: #{tpu_custom_call.1} parent=1 // pred_check
      _
    $region7: #{tpu_custom_call.1} parent=1 // pred_check_branch
      %33 = sbr.rel (0) target = $region9
    $region8: #{tpu_custom_call.1} parent=1 // pred_region
      %35 = vsyncadd [#allocation6], 0
      %s36 = sshll.u32 %s1, 4
      %s37 = int_to_ptr.hbm [resolvable:$true] %s36
      %s38 = sshll.u32 [#allocation5], 4
      %s39 = int_to_ptr.vmem [resolvable:$true] %s38
      %44 = dma.hbm_to_vmem [thread:$0]  %s37, 256, %s39, [#allocation6], 128, 128, 8
    $region9: #{tpu_custom_call.1} parent=1 // pred_fallthru
      _
    // Predicated region
    $region10: #{tpu_custom_call.1} parent=1 // pred_check
      _
    $region11: #{tpu_custom_call.1} parent=1 // pred_check_branch
      %46 = sbr.rel (0) target = $region13
    $region12: #{tpu_custom_call.1} parent=1 // pred_region
      %48 = vsyncadd [#allocation6], 0
      %s49 = sshll.u32 %s2, 4
      %s50 = int_to_ptr.hbm [resolvable:$true] %s49
      %s51 = sshll.u32 [#allocation7], 4
      %s52 = int_to_ptr.vmem [resolvable:$true] %s51
      %57 = dma.hbm_to_vmem [thread:$0]  %s50, 6144, %s52, [#allocation6], 128, 128, 8
    $region13: #{tpu_custom_call.1} parent=1 // pred_fallthru
      _
    // Predicated region
    $region14: #{tpu_custom_call.1} parent=1 // pred_check
      _
    $region15: #{tpu_custom_call.1} parent=1 // pred_check_branch
      %59 = sbr.rel (0) target = $region17
    $region16: #{tpu_custom_call.1} parent=1 // pred_region
      %61 = vsyncadd [#allocation9], 0
      %s62 = sshll.u32 %s3, 4
      %s63 = int_to_ptr.hbm [resolvable:$true] %s62
      %s64 = sshll.u32 [#allocation8], 4
      %s65 = int_to_ptr.vmem [resolvable:$true] %s64
      %70 = dma.hbm_to_vmem [thread:$0]  %s63, 6144, %s65, [#allocation9], 128, 128, 8
    $region17: #{tpu_custom_call.1} parent=1 // pred_fallthru
      _
    // Predicated region
    $region18: #{tpu_custom_call.1} parent=1 // pred_check
      _
    $region19: #{tpu_custom_call.1} parent=1 // pred_check_branch
      %72 = sbr.rel (0) target = $region21
    $region20: #{tpu_custom_call.1} parent=1 // pred_region
      _
    $region21: #{tpu_custom_call.1} parent=1 // pred_fallthru
      _
    // Predicated region
    $region22: #{tpu_custom_call.1} parent=1 // pred_check
      _
    $region23: #{tpu_custom_call.1} parent=1 // pred_check_branch
      %74 = sbr.rel (0) target = $region25
    $region24: #{tpu_custom_call.1} parent=1 // pred_region
      %76 = vsyncadd [#allocation9], 0
      %s77 = sshll.u32 %s5, 4
      %s78 = int_to_ptr.hbm [resolvable:$true] %s77
      %s79 = sshll.u32 [#allocation10], 4
      %s80 = int_to_ptr.vmem [resolvable:$true] %s79
      %85 = dma.hbm_to_vmem [thread:$0]  %s78, 6144, %s80, [#allocation9], 128, 128, 8
    $region25: #{tpu_custom_call.1} parent=1 // pred_fallthru
      _
    // Predicated region
    $region26: #{tpu_custom_call.1} parent=1 // pred_check
      _
    $region27: #{tpu_custom_call.1} parent=1 // pred_check_branch
      %87 = sbr.rel (0) target = $region29
    $region28: #{tpu_custom_call.1} parent=1 // pred_region
      _
    $region29: #{tpu_custom_call.1} parent=1 // pred_fallthru
      _
    // Predicated region
    $region30: #{tpu_custom_call.1} parent=1 // pred_check
      _
    $region31: #{tpu_custom_call.1} parent=1 // pred_check_branch
      %89 = sbr.rel (0) target = $region33
    $region32: #{tpu_custom_call.1} parent=1 // pred_region
      %91 = vsyncadd [#allocation12], 0
      %s92 = sshll.u32 %s7, 4
      %s93 = int_to_ptr.hbm [resolvable:$true] %s92
      %s94 = sshll.u32 [#allocation11], 4
      %s95 = int_to_ptr.vmem [resolvable:$true] %s94
      %100 = dma.hbm_to_vmem [thread:$0]  %s93, 2048, %s95, [#allocation12], 128, 128, 8
    $region33: #{tpu_custom_call.1} parent=1 // pred_fallthru
      _
    // Predicated region
    $region34: #{tpu_custom_call.1} parent=1 // pred_check
      _
    $region35: #{tpu_custom_call.1} parent=1 // pred_check_branch
      %102 = sbr.rel (0) target = $region37
    $region36: #{tpu_custom_call.1} parent=1 // pred_region
      _
    $region37: #{tpu_custom_call.1} parent=1 // pred_fallthru
      _
    // Predicated region
    $region38: #{tpu_custom_call.1} parent=1 // pred_check
      _
    $region39: #{tpu_custom_call.1} parent=1 // pred_check_branch
      %104 = sbr.rel (0) target = $region41
    $region40: #{tpu_custom_call.1} parent=1 // pred_region
      %106 = dma.done [#allocation3], 512
    $region41: #{tpu_custom_call.1} parent=1 // pred_fallthru
      _
    // Predicated region
    $region42: #{tpu_custom_call.1} parent=1 // pred_check
      _
    $region43: #{tpu_custom_call.1} parent=1 // pred_check_branch
      %108 = sbr.rel (0) target = $region45
    $region44: #{tpu_custom_call.1} parent=1 // pred_region
      %110 = dma.done [#allocation6], 256
    $region45: #{tpu_custom_call.1} parent=1 // pred_fallthru
      _
    // Predicated region
    $region46: #{tpu_custom_call.1} parent=1 // pred_check
      _
    $region47: #{tpu_custom_call.1} parent=1 // pred_check_branch
      %112 = sbr.rel (0) target = $region49
    $region48: #{tpu_custom_call.1} parent=1 // pred_region
      %114 = dma.done [#allocation6], 6144
    $region49: #{tpu_custom_call.1} parent=1 // pred_fallthru
      _
    // Predicated region
    $region50: #{tpu_custom_call.1} parent=1 // pred_check
      _
    $region51: #{tpu_custom_call.1} parent=1 // pred_check_branch
      %116 = sbr.rel (0) target = $region53
    $region52: #{tpu_custom_call.1} parent=1 // pred_region
      %118 = dma.done [#allocation9], 6144
    $region53: #{tpu_custom_call.1} parent=1 // pred_fallthru
      _
    // Predicated region
    $region54: #{tpu_custom_call.1} parent=1 // pred_check
      _
    $region55: #{tpu_custom_call.1} parent=1 // pred_check_branch
      %120 = sbr.rel (0) target = $region57
    $region56: #{tpu_custom_call.1} parent=1 // pred_region
      %122 = dma.done [#allocation9], 6144
    $region57: #{tpu_custom_call.1} parent=1 // pred_fallthru
      _
    // Predicated region
    $region58: #{tpu_custom_call.1} parent=1 // pred_check
      _
    $region59: #{tpu_custom_call.1} parent=1 // pred_check_branch
      %124 = sbr.rel (0) target = $region61
    $region60: #{tpu_custom_call.1} parent=1 // pred_region
      %126 = dma.done [#allocation12], 2048
    $region61: #{tpu_custom_call.1} parent=1 // pred_fallthru
      _
    %v127 = vld [vmem:[#allocation2] sm:$0xff]
    %v128 = vld [vmem:[#allocation2 + $0x8] sm:$0xff]
    %v129 = vld [vmem:[#allocation2 + $0x10] sm:$0xff]
    %v130 = vld [vmem:[#allocation2 + $0x18] sm:$0xff]
    %v131 = vld [vmem:[#allocation7] sm:$0xff]
    %v132 = vld [vmem:[#allocation7 + $0x8] sm:$0xff]
    %v133 = vld [vmem:[#allocation7 + $0x10] sm:$0xff]
    %v134 = vld [vmem:[#allocation7 + $0x18] sm:$0xff]
    %v135 = vld [vmem:[#allocation7 + $0x20] sm:$0xff]
    %v136 = vld [vmem:[#allocation7 + $0x28] sm:$0xff]
    %v137 = vld [vmem:[#allocation7 + $0x30] sm:$0xff]
    %v138 = vld [vmem:[#allocation7 + $0x38] sm:$0xff]
    %v139 = vld [vmem:[#allocation7 + $0x40] sm:$0xff]
    %v140 = vld [vmem:[#allocation7 + $0x48] sm:$0xff]
    %v141 = vld [vmem:[#allocation7 + $0x50] sm:$0xff]
    %v142 = vld [vmem:[#allocation7 + $0x58] sm:$0xff]
    %v143 = vld [vmem:[#allocation7 + $0x60] sm:$0xff]
    %v144 = vld [vmem:[#allocation7 + $0x68] sm:$0xff]
    %v145 = vld [vmem:[#allocation7 + $0x70] sm:$0xff]
    %v146 = vld [vmem:[#allocation7 + $0x78] sm:$0xff]
    %v147 = vld [vmem:[#allocation7 + $0x80] sm:$0xff]
    %v148 = vld [vmem:[#allocation7 + $0x88] sm:$0xff]
    %v149 = vld [vmem:[#allocation7 + $0x90] sm:$0xff]
    %v150 = vld [vmem:[#allocation7 + $0x98] sm:$0xff]
    %v151 = vld [vmem:[#allocation7 + $0xa0] sm:$0xff]
    %v152 = vld [vmem:[#allocation7 + $0xa8] sm:$0xff]
    %v153 = vld [vmem:[#allocation7 + $0xb0] sm:$0xff]
    %v154 = vld [vmem:[#allocation7 + $0xb8] sm:$0xff]
    %v155 = vld [vmem:[#allocation7 + $0xc0] sm:$0xff]
    %v156 = vld [vmem:[#allocation7 + $0xc8] sm:$0xff]
    %v157 = vld [vmem:[#allocation7 + $0xd0] sm:$0xff]
    %v158 = vld [vmem:[#allocation7 + $0xd8] sm:$0xff]
    %v159 = vld [vmem:[#allocation7 + $0xe0] sm:$0xff]
    %v160 = vld [vmem:[#allocation7 + $0xe8] sm:$0xff]
    %v161 = vld [vmem:[#allocation7 + $0xf0] sm:$0xff]
    %v162 = vld [vmem:[#allocation7 + $0xf8] sm:$0xff]
    %v163 = vld [vmem:[#allocation7 + $0x100] sm:$0xff]
    %v164 = vld [vmem:[#allocation7 + $0x108] sm:$0xff]
    %v165 = vld [vmem:[#allocation7 + $0x110] sm:$0xff]
    %v166 = vld [vmem:[#allocation7 + $0x118] sm:$0xff]
    %v167 = vld [vmem:[#allocation7 + $0x120] sm:$0xff]
    %v168 = vld [vmem:[#allocation7 + $0x128] sm:$0xff]
    %v169 = vld [vmem:[#allocation7 + $0x130] sm:$0xff]
    %v170 = vld [vmem:[#allocation7 + $0x138] sm:$0xff]
    %v171 = vld [vmem:[#allocation7 + $0x140] sm:$0xff]
    %v172 = vld [vmem:[#allocation7 + $0x148] sm:$0xff]
    %v173 = vld [vmem:[#allocation7 + $0x150] sm:$0xff]
    %v174 = vld [vmem:[#allocation7 + $0x158] sm:$0xff]
    %v175 = vld [vmem:[#allocation7 + $0x160] sm:$0xff]
    %v176 = vld [vmem:[#allocation7 + $0x168] sm:$0xff]
    %v177 = vld [vmem:[#allocation7 + $0x170] sm:$0xff]
    %v178 = vld [vmem:[#allocation7 + $0x178] sm:$0xff]
    %v181 = vrot.slane %v128, 7
    %v182 = vrot.slane %v130, 7
    %vm187 = vcmask 1040384
    %v188 = vrot.slane %v127, 7
    %v189 = vsel %vm187, %v188, %v181
    %v190 = vrot.slane %v129, 7
    %v191 = vsel %vm187, %v190, %v182
    %v196 = vsel %vm187, %v181, %v188
    %v197 = vsel %vm187, %v182, %v190
    %vm200 = vcmask 1046528
    %v201 = vrot.slane %v196, 1
    %v202 = vrot.slane %v189, 1
    %v203 = vsel %vm200, %v201, %v202
    %v204 = vsel %vm200, %v202, %v201
    %v205 = vrot.slane %v197, 1
    %v206 = vrot.slane %v191, 1
    %v207 = vsel %vm200, %v205, %v206
    %v208 = vsel %vm200, %v206, %v205
    %vm213 = vcmask 1045504
    %v214 = vrot.slane %v196, 2
    %v215 = vrot.slane %v189, 2
    %v216 = vsel %vm213, %v214, %v215
    %v217 = vsel %vm213, %v215, %v214
    %v218 = vrot.slane %v197, 2
    %v219 = vrot.slane %v191, 2
    %v220 = vsel %vm213, %v218, %v219
    %v221 = vsel %vm213, %v219, %v218
    %226 = vmatpush.msra.mxu0 %v146
    %227 = vmatpush.msra.mxu0 %v145
    %228 = vmatpush.msra.mxu0 %v144
    %229 = vmatpush.msra.mxu0 %v143
    %230 = vmatpush.msra.mxu0 %v142
    %231 = vmatpush.msra.mxu0 %v141
    %232 = vmatpush.msra.mxu0 %v140
    %233 = vmatpush.msra.mxu0 %v139
    %234 = vmatpush.msra.mxu0 %v138
    %235 = vmatpush.msra.mxu0 %v137
    %236 = vmatpush.msra.mxu0 %v136
    %237 = vmatpush.msra.mxu0 %v135
    %238 = vmatpush.msra.mxu0 %v134
    %239 = vmatpush.msra.mxu0 %v133
    %240 = vmatpush.msra.mxu0 %v132
    %241 = vmatpush.msra.mxu0 %v131
    %242 = vmatmul.f32.gmra.mxu0 %v196
    %v243 = vpop.f32.mrf.mxu0
    %v244 = vadd.f32 0.0, %v243
    %245 = vmatmul.f32.gmra.mxu0 %v189
    %v246 = vpop.f32.mrf.mxu0
    %v247 = vadd.f32 0.0, %v246
    %248 = vmatmul.f32.gmra.mxu0 %v197
    %v249 = vpop.f32.mrf.mxu0
    %v250 = vadd.f32 0.0, %v249
    %251 = vmatmul.f32.gmra.mxu0 %v191
    %v252 = vpop.f32.mrf.mxu0
    %v253 = vadd.f32 0.0, %v252
    %254 = vdwg.mxu0
    %255 = vmatpush.msra.mxu0 %v162
    %256 = vmatpush.msra.mxu0 %v161
    %257 = vmatpush.msra.mxu0 %v160
    %258 = vmatpush.msra.mxu0 %v159
    %259 = vmatpush.msra.mxu0 %v158
    %260 = vmatpush.msra.mxu0 %v157
    %261 = vmatpush.msra.mxu0 %v156
    %262 = vmatpush.msra.mxu0 %v155
    %263 = vmatpush.msra.mxu0 %v154
    %264 = vmatpush.msra.mxu0 %v153
    %265 = vmatpush.msra.mxu0 %v152
    %266 = vmatpush.msra.mxu0 %v151
    %267 = vmatpush.msra.mxu0 %v150
    %268 = vmatpush.msra.mxu0 %v149
    %269 = vmatpush.msra.mxu0 %v148
    %270 = vmatpush.msra.mxu0 %v147
    %271 = vmatmul.f32.gmra.mxu0 %v203
    %v272 = vpop.f32.mrf.mxu0
    %v273 = vadd.f32 %v244, %v272
    %274 = vmatmul.f32.gmra.mxu0 %v204
    %v275 = vpop.f32.mrf.mxu0
    %v276 = vadd.f32 %v247, %v275
    %277 = vmatmul.f32.gmra.mxu0 %v207
    %v278 = vpop.f32.mrf.mxu0
    %v279 = vadd.f32 %v250, %v278
    %280 = vmatmul.f32.gmra.mxu0 %v208
    %v281 = vpop.f32.mrf.mxu0
    %v282 = vadd.f32 %v253, %v281
    %283 = vdwg.mxu0
    %284 = vmatpush.msra.mxu0 %v178
    %285 = vmatpush.msra.mxu0 %v177
    %286 = vmatpush.msra.mxu0 %v176
    %287 = vmatpush.msra.mxu0 %v175
    %288 = vmatpush.msra.mxu0 %v174
    %289 = vmatpush.msra.mxu0 %v173
    %290 = vmatpush.msra.mxu0 %v172
    %291 = vmatpush.msra.mxu0 %v171
    %292 = vmatpush.msra.mxu0 %v170
    %293 = vmatpush.msra.mxu0 %v169
    %294 = vmatpush.msra.mxu0 %v168
    %295 = vmatpush.msra.mxu0 %v167
    %296 = vmatpush.msra.mxu0 %v166
    %297 = vmatpush.msra.mxu0 %v165
    %298 = vmatpush.msra.mxu0 %v164
    %299 = vmatpush.msra.mxu0 %v163
    %300 = vmatmul.f32.gmra.mxu0 %v216
    %v301 = vpop.f32.mrf.mxu0
    %v302 = vadd.f32 %v273, %v301
    %303 = vmatmul.f32.gmra.mxu0 %v217
    %v304 = vpop.f32.mrf.mxu0
    %v305 = vadd.f32 %v276, %v304
    %306 = vmatmul.f32.gmra.mxu0 %v220
    %v307 = vpop.f32.mrf.mxu0
    %v308 = vadd.f32 %v279, %v307
    %309 = vmatmul.f32.gmra.mxu0 %v221
    %v310 = vpop.f32.mrf.mxu0
    %v311 = vadd.f32 %v282, %v310
    %312 = vdwg.mxu0
    %v313 = vld [vmem:[#allocation5] sm:$0xff]
    %v314 = vld [vmem:[#allocation5 + $0x8] sm:$0xff]
    %v315 = vadd.f32 %v302, %v313
    %v316 = vadd.f32 %v305, %v314
    %v317 = vadd.f32 %v308, %v313
    %v318 = vadd.f32 %v311, %v314
    %v319 = vld [vmem:[#allocation8] sm:$0xff]
    %v320 = vld [vmem:[#allocation8 + $0x8] sm:$0xff]
    %v321 = vld [vmem:[#allocation8 + $0x10] sm:$0xff]
    %v322 = vld [vmem:[#allocation8 + $0x18] sm:$0xff]
    %v323 = vld [vmem:[#allocation8 + $0x20] sm:$0xff]
    %v324 = vld [vmem:[#allocation8 + $0x28] sm:$0xff]
    %v325 = vld [vmem:[#allocation8 + $0x30] sm:$0xff]
    %v326 = vld [vmem:[#allocation8 + $0x38] sm:$0xff]
    %v327 = vld [vmem:[#allocation8 + $0x40] sm:$0xff]
    %v328 = vld [vmem:[#allocation8 + $0x48] sm:$0xff]
    %v329 = vld [vmem:[#allocation8 + $0x50] sm:$0xff]
    %v330 = vld [vmem:[#allocation8 + $0x58] sm:$0xff]
    %v331 = vld [vmem:[#allocation8 + $0x60] sm:$0xff]
    %v332 = vld [vmem:[#allocation8 + $0x68] sm:$0xff]
    %v333 = vld [vmem:[#allocation8 + $0x70] sm:$0xff]
    %v334 = vld [vmem:[#allocation8 + $0x78] sm:$0xff]
    %v335 = vld [vmem:[#allocation8 + $0x80] sm:$0xff]
    %v336 = vld [vmem:[#allocation8 + $0x88] sm:$0xff]
    %v337 = vld [vmem:[#allocation8 + $0x90] sm:$0xff]
    %v338 = vld [vmem:[#allocation8 + $0x98] sm:$0xff]
    %v339 = vld [vmem:[#allocation8 + $0xa0] sm:$0xff]
    %v340 = vld [vmem:[#allocation8 + $0xa8] sm:$0xff]
    %v341 = vld [vmem:[#allocation8 + $0xb0] sm:$0xff]
    %v342 = vld [vmem:[#allocation8 + $0xb8] sm:$0xff]
    %v343 = vld [vmem:[#allocation8 + $0xc0] sm:$0xff]
    %v344 = vld [vmem:[#allocation8 + $0xc8] sm:$0xff]
    %v345 = vld [vmem:[#allocation8 + $0xd0] sm:$0xff]
    %v346 = vld [vmem:[#allocation8 + $0xd8] sm:$0xff]
    %v347 = vld [vmem:[#allocation8 + $0xe0] sm:$0xff]
    %v348 = vld [vmem:[#allocation8 + $0xe8] sm:$0xff]
    %v349 = vld [vmem:[#allocation8 + $0xf0] sm:$0xff]
    %v350 = vld [vmem:[#allocation8 + $0xf8] sm:$0xff]
    %v351 = vld [vmem:[#allocation8 + $0x100] sm:$0xff]
    %v352 = vld [vmem:[#allocation8 + $0x108] sm:$0xff]
    %v353 = vld [vmem:[#allocation8 + $0x110] sm:$0xff]
    %v354 = vld [vmem:[#allocation8 + $0x118] sm:$0xff]
    %v355 = vld [vmem:[#allocation8 + $0x120] sm:$0xff]
    %v356 = vld [vmem:[#allocation8 + $0x128] sm:$0xff]
    %v357 = vld [vmem:[#allocation8 + $0x130] sm:$0xff]
    %v358 = vld [vmem:[#allocation8 + $0x138] sm:$0xff]
    %v359 = vld [vmem:[#allocation8 + $0x140] sm:$0xff]
    %v360 = vld [vmem:[#allocation8 + $0x148] sm:$0xff]
    %v361 = vld [vmem:[#allocation8 + $0x150] sm:$0xff]
    %v362 = vld [vmem:[#allocation8 + $0x158] sm:$0xff]
    %v363 = vld [vmem:[#allocation8 + $0x160] sm:$0xff]
    %v364 = vld [vmem:[#allocation8 + $0x168] sm:$0xff]
    %v365 = vld [vmem:[#allocation8 + $0x170] sm:$0xff]
    %v366 = vld [vmem:[#allocation8 + $0x178] sm:$0xff]
    %v371 = vrot.slane %v315, 7
    %v372 = vrot.slane %v316, 7
    %v373 = vsel %vm187, %v371, %v372
    %v374 = vrot.slane %v317, 7
    %v375 = vrot.slane %v318, 7
    %v376 = vsel %vm187, %v374, %v375
    %v383 = vsel %vm187, 0.0, %v371
    %v384 = vsel %vm187, 0.0, %v374
    %v385 = vsel %vm187, %v372, 0.0
    %v386 = vsel %vm187, %v375, 0.0
    %v391 = vrot.slane %v383, 1
    %v392 = vrot.slane %v373, 1
    %v393 = vsel %vm200, %v391, %v392
    %v394 = vrot.slane %v385, 1
    %v395 = vsel %vm200, %v392, %v394
    %v396 = vrot.slane %v384, 1
    %v397 = vrot.slane %v376, 1
    %v398 = vsel %vm200, %v396, %v397
    %v399 = vrot.slane %v386, 1
    %v400 = vsel %vm200, %v397, %v399
    %v405 = vrot.slane %v383, 2
    %v406 = vrot.slane %v373, 2
    %v407 = vsel %vm213, %v405, %v406
    %v408 = vrot.slane %v385, 2
    %v409 = vsel %vm213, %v406, %v408
    %v410 = vrot.slane %v384, 2
    %v411 = vrot.slane %v376, 2
    %v412 = vsel %vm213, %v410, %v411
    %v413 = vrot.slane %v386, 2
    %v414 = vsel %vm213, %v411, %v413
    %419 = vmatpush.msra.mxu0 %v334
    %420 = vmatpush.msra.mxu0 %v333
    %421 = vmatpush.msra.mxu0 %v332
    %422 = vmatpush.msra.mxu0 %v331
    %423 = vmatpush.msra.mxu0 %v330
    %424 = vmatpush.msra.mxu0 %v329
    %425 = vmatpush.msra.mxu0 %v328
    %426 = vmatpush.msra.mxu0 %v327
    %427 = vmatpush.msra.mxu0 %v326
    %428 = vmatpush.msra.mxu0 %v325
    %429 = vmatpush.msra.mxu0 %v324
    %430 = vmatpush.msra.mxu0 %v323
    %431 = vmatpush.msra.mxu0 %v322
    %432 = vmatpush.msra.mxu0 %v321
    %433 = vmatpush.msra.mxu0 %v320
    %434 = vmatpush.msra.mxu0 %v319
    %435 = vmatmul.f32.gmra.mxu0 %v383
    %v436 = vpop.f32.mrf.mxu0
    %v437 = vadd.f32 0.0, %v436
    %438 = vmatmul.f32.gmra.mxu0 %v373
    %v439 = vpop.f32.mrf.mxu0
    %v440 = vadd.f32 0.0, %v439
    %441 = vmatmul.f32.gmra.mxu0 %v384
    %v442 = vpop.f32.mrf.mxu0
    %v443 = vadd.f32 0.0, %v442
    %444 = vmatmul.f32.gmra.mxu0 %v376
    %v445 = vpop.f32.mrf.mxu0
    %v446 = vadd.f32 0.0, %v445
    %447 = vdwg.mxu0
    %448 = vmatpush.msra.mxu0 %v350
    %449 = vmatpush.msra.mxu0 %v349
    %450 = vmatpush.msra.mxu0 %v348
    %451 = vmatpush.msra.mxu0 %v347
    %452 = vmatpush.msra.mxu0 %v346
    %453 = vmatpush.msra.mxu0 %v345
    %454 = vmatpush.msra.mxu0 %v344
    %455 = vmatpush.msra.mxu0 %v343
    %456 = vmatpush.msra.mxu0 %v342
    %457 = vmatpush.msra.mxu0 %v341
    %458 = vmatpush.msra.mxu0 %v340
    %459 = vmatpush.msra.mxu0 %v339
    %460 = vmatpush.msra.mxu0 %v338
    %461 = vmatpush.msra.mxu0 %v337
    %462 = vmatpush.msra.mxu0 %v336
    %463 = vmatpush.msra.mxu0 %v335
    %464 = vmatmul.f32.gmra.mxu0 %v393
    %v465 = vpop.f32.mrf.mxu0
    %v466 = vadd.f32 %v437, %v465
    %467 = vmatmul.f32.gmra.mxu0 %v395
    %v468 = vpop.f32.mrf.mxu0
    %v469 = vadd.f32 %v440, %v468
    %470 = vmatmul.f32.gmra.mxu0 %v398
    %v471 = vpop.f32.mrf.mxu0
    %v472 = vadd.f32 %v443, %v471
    %473 = vmatmul.f32.gmra.mxu0 %v400
    %v474 = vpop.f32.mrf.mxu0
    %v475 = vadd.f32 %v446, %v474
    %476 = vdwg.mxu0
    %477 = vmatpush.msra.mxu0 %v366
    %478 = vmatpush.msra.mxu0 %v365
    %479 = vmatpush.msra.mxu0 %v364
    %480 = vmatpush.msra.mxu0 %v363
    %481 = vmatpush.msra.mxu0 %v362
    %482 = vmatpush.msra.mxu0 %v361
    %483 = vmatpush.msra.mxu0 %v360
    %484 = vmatpush.msra.mxu0 %v359
    %485 = vmatpush.msra.mxu0 %v358
    %486 = vmatpush.msra.mxu0 %v357
    %487 = vmatpush.msra.mxu0 %v356
    %488 = vmatpush.msra.mxu0 %v355
    %489 = vmatpush.msra.mxu0 %v354
    %490 = vmatpush.msra.mxu0 %v353
    %491 = vmatpush.msra.mxu0 %v352
    %492 = vmatpush.msra.mxu0 %v351
    %493 = vmatmul.f32.gmra.mxu0 %v407
    %v494 = vpop.f32.mrf.mxu0
    %v495 = vadd.f32 %v466, %v494
    %496 = vmatmul.f32.gmra.mxu0 %v409
    %v497 = vpop.f32.mrf.mxu0
    %v498 = vadd.f32 %v469, %v497
    %499 = vmatmul.f32.gmra.mxu0 %v412
    %v500 = vpop.f32.mrf.mxu0
    %v501 = vadd.f32 %v472, %v500
    %502 = vmatmul.f32.gmra.mxu0 %v414
    %v503 = vpop.f32.mrf.mxu0
    %v504 = vadd.f32 %v475, %v503
    %505 = vdwg.mxu0
    %v506 = vld [vmem:[%s4] sm:$0x1]
    %v508 = vperm.slane %v506, 0
    %v510 = vadd.f32 %v495, %v508
    %v511 = vadd.f32 %v498, %v508
    %v512 = vadd.f32 %v501, %v508
    %v513 = vadd.f32 %v504, %v508
    %vm514 = vcmp.gt.f32.partialorder %v510, 0.0
    %vm515 = vcmp.gt.f32.partialorder %v511, 0.0
    %vm516 = vcmp.gt.f32.partialorder %v512, 0.0
    %vm517 = vcmp.gt.f32.partialorder %v513, 0.0
    %v518 = vmin.f32 %v510, 0.0
    %v519 = vmin.f32 %v511, 0.0
    %v520 = vmin.f32 %v512, 0.0
    %v521 = vmin.f32 %v513, 0.0
    %v522 = vmul.f32 %v518, 1.442695
    %v523 = vpow.pop %v522
    %v524 = vmul.f32 %v519, 1.442695
    %v525 = vpow.pop %v524
    %v526 = vmul.f32 %v520, 1.442695
    %v527 = vpow.pop %v526
    %v528 = vmul.f32 %v521, 1.442695
    %v529 = vpow.pop %v528
    %v530 = vsub.f32 %v523, 1.0
    %v531 = vsub.f32 %v525, 1.0
    %v532 = vsub.f32 %v527, 1.0
    %v533 = vsub.f32 %v529, 1.0
    %v534 = vsel %vm514, %v510, %v530
    %v535 = vsel %vm515, %v511, %v531
    %v536 = vsel %vm516, %v512, %v532
    %v537 = vsel %vm517, %v513, %v533
    %v538 = vld [vmem:[#allocation10] sm:$0xff]
    %v539 = vld [vmem:[#allocation10 + $0x8] sm:$0xff]
    %v540 = vld [vmem:[#allocation10 + $0x10] sm:$0xff]
    %v541 = vld [vmem:[#allocation10 + $0x18] sm:$0xff]
    %v542 = vld [vmem:[#allocation10 + $0x20] sm:$0xff]
    %v543 = vld [vmem:[#allocation10 + $0x28] sm:$0xff]
    %v544 = vld [vmem:[#allocation10 + $0x30] sm:$0xff]
    %v545 = vld [vmem:[#allocation10 + $0x38] sm:$0xff]
    %v546 = vld [vmem:[#allocation10 + $0x40] sm:$0xff]
    %v547 = vld [vmem:[#allocation10 + $0x48] sm:$0xff]
    %v548 = vld [vmem:[#allocation10 + $0x50] sm:$0xff]
    %v549 = vld [vmem:[#allocation10 + $0x58] sm:$0xff]
    %v550 = vld [vmem:[#allocation10 + $0x60] sm:$0xff]
    %v551 = vld [vmem:[#allocation10 + $0x68] sm:$0xff]
    %v552 = vld [vmem:[#allocation10 + $0x70] sm:$0xff]
    %v553 = vld [vmem:[#allocation10 + $0x78] sm:$0xff]
    %v554 = vld [vmem:[#allocation10 + $0x80] sm:$0xff]
    %v555 = vld [vmem:[#allocation10 + $0x88] sm:$0xff]
    %v556 = vld [vmem:[#allocation10 + $0x90] sm:$0xff]
    %v557 = vld [vmem:[#allocation10 + $0x98] sm:$0xff]
    %v558 = vld [vmem:[#allocation10 + $0xa0] sm:$0xff]
    %v559 = vld [vmem:[#allocation10 + $0xa8] sm:$0xff]
    %v560 = vld [vmem:[#allocation10 + $0xb0] sm:$0xff]
    %v561 = vld [vmem:[#allocation10 + $0xb8] sm:$0xff]
    %v562 = vld [vmem:[#allocation10 + $0xc0] sm:$0xff]
    %v563 = vld [vmem:[#allocation10 + $0xc8] sm:$0xff]
    %v564 = vld [vmem:[#allocation10 + $0xd0] sm:$0xff]
    %v565 = vld [vmem:[#allocation10 + $0xd8] sm:$0xff]
    %v566 = vld [vmem:[#allocation10 + $0xe0] sm:$0xff]
    %v567 = vld [vmem:[#allocation10 + $0xe8] sm:$0xff]
    %v568 = vld [vmem:[#allocation10 + $0xf0] sm:$0xff]
    %v569 = vld [vmem:[#allocation10 + $0xf8] sm:$0xff]
    %v570 = vld [vmem:[#allocation10 + $0x100] sm:$0xff]
    %v571 = vld [vmem:[#allocation10 + $0x108] sm:$0xff]
    %v572 = vld [vmem:[#allocation10 + $0x110] sm:$0xff]
    %v573 = vld [vmem:[#allocation10 + $0x118] sm:$0xff]
    %v574 = vld [vmem:[#allocation10 + $0x120] sm:$0xff]
    %v575 = vld [vmem:[#allocation10 + $0x128] sm:$0xff]
    %v576 = vld [vmem:[#allocation10 + $0x130] sm:$0xff]
    %v577 = vld [vmem:[#allocation10 + $0x138] sm:$0xff]
    %v578 = vld [vmem:[#allocation10 + $0x140] sm:$0xff]
    %v579 = vld [vmem:[#allocation10 + $0x148] sm:$0xff]
    %v580 = vld [vmem:[#allocation10 + $0x150] sm:$0xff]
    %v581 = vld [vmem:[#allocation10 + $0x158] sm:$0xff]
    %v582 = vld [vmem:[#allocation10 + $0x160] sm:$0xff]
    %v583 = vld [vmem:[#allocation10 + $0x168] sm:$0xff]
    %v584 = vld [vmem:[#allocation10 + $0x170] sm:$0xff]
    %v585 = vld [vmem:[#allocation10 + $0x178] sm:$0xff]
    %v590 = vrot.slane %v534, 7
    %v591 = vrot.slane %v535, 7
    %v592 = vsel %vm187, %v590, %v591
    %v593 = vrot.slane %v536, 7
    %v594 = vrot.slane %v537, 7
    %v595 = vsel %vm187, %v593, %v594
    %v602 = vsel %vm187, 0.0, %v590
    %v603 = vsel %vm187, 0.0, %v593
    %v604 = vsel %vm187, %v591, 0.0
    %v605 = vsel %vm187, %v594, 0.0
    %v610 = vrot.slane %v602, 1
    %v611 = vrot.slane %v592, 1
    %v612 = vsel %vm200, %v610, %v611
    %v613 = vrot.slane %v604, 1
    %v614 = vsel %vm200, %v611, %v613
    %v615 = vrot.slane %v603, 1
    %v616 = vrot.slane %v595, 1
    %v617 = vsel %vm200, %v615, %v616
    %v618 = vrot.slane %v605, 1
    %v619 = vsel %vm200, %v616, %v618
    %v624 = vrot.slane %v602, 2
    %v625 = vrot.slane %v592, 2
    %v626 = vsel %vm213, %v624, %v625
    %v627 = vrot.slane %v604, 2
    %v628 = vsel %vm213, %v625, %v627
    %v629 = vrot.slane %v603, 2
    %v630 = vrot.slane %v595, 2
    %v631 = vsel %vm213, %v629, %v630
    %v632 = vrot.slane %v605, 2
    %v633 = vsel %vm213, %v630, %v632
    %638 = vmatpush.msra.mxu0 %v553
    %639 = vmatpush.msra.mxu0 %v552
    %640 = vmatpush.msra.mxu0 %v551
    %641 = vmatpush.msra.mxu0 %v550
    %642 = vmatpush.msra.mxu0 %v549
    %643 = vmatpush.msra.mxu0 %v548
    %644 = vmatpush.msra.mxu0 %v547
    %645 = vmatpush.msra.mxu0 %v546
    %646 = vmatpush.msra.mxu0 %v545
    %647 = vmatpush.msra.mxu0 %v544
    %648 = vmatpush.msra.mxu0 %v543
    %649 = vmatpush.msra.mxu0 %v542
    %650 = vmatpush.msra.mxu0 %v541
    %651 = vmatpush.msra.mxu0 %v540
    %652 = vmatpush.msra.mxu0 %v539
    %653 = vmatpush.msra.mxu0 %v538
    %654 = vmatmul.f32.gmra.mxu0 %v602
    %v655 = vpop.f32.mrf.mxu0
    %v656 = vadd.f32 0.0, %v655
    %657 = vmatmul.f32.gmra.mxu0 %v592
    %v658 = vpop.f32.mrf.mxu0
    %v659 = vadd.f32 0.0, %v658
    %660 = vmatmul.f32.gmra.mxu0 %v603
    %v661 = vpop.f32.mrf.mxu0
    %v662 = vadd.f32 0.0, %v661
    %663 = vmatmul.f32.gmra.mxu0 %v595
    %v664 = vpop.f32.mrf.mxu0
    %v665 = vadd.f32 0.0, %v664
    %666 = vdwg.mxu0
    %667 = vmatpush.msra.mxu0 %v569
    %668 = vmatpush.msra.mxu0 %v568
    %669 = vmatpush.msra.mxu0 %v567
    %670 = vmatpush.msra.mxu0 %v566
    %671 = vmatpush.msra.mxu0 %v565
    %672 = vmatpush.msra.mxu0 %v564
    %673 = vmatpush.msra.mxu0 %v563
    %674 = vmatpush.msra.mxu0 %v562
    %675 = vmatpush.msra.mxu0 %v561
    %676 = vmatpush.msra.mxu0 %v560
    %677 = vmatpush.msra.mxu0 %v559
    %678 = vmatpush.msra.mxu0 %v558
    %679 = vmatpush.msra.mxu0 %v557
    %680 = vmatpush.msra.mxu0 %v556
    %681 = vmatpush.msra.mxu0 %v555
    %682 = vmatpush.msra.mxu0 %v554
    %683 = vmatmul.f32.gmra.mxu0 %v612
    %v684 = vpop.f32.mrf.mxu0
    %v685 = vadd.f32 %v656, %v684
    %686 = vmatmul.f32.gmra.mxu0 %v614
    %v687 = vpop.f32.mrf.mxu0
    %v688 = vadd.f32 %v659, %v687
    %689 = vmatmul.f32.gmra.mxu0 %v617
    %v690 = vpop.f32.mrf.mxu0
    %v691 = vadd.f32 %v662, %v690
    %692 = vmatmul.f32.gmra.mxu0 %v619
    %v693 = vpop.f32.mrf.mxu0
    %v694 = vadd.f32 %v665, %v693
    %695 = vdwg.mxu0
    %696 = vmatpush.msra.mxu0 %v585
    %697 = vmatpush.msra.mxu0 %v584
    %698 = vmatpush.msra.mxu0 %v583
    %699 = vmatpush.msra.mxu0 %v582
    %700 = vmatpush.msra.mxu0 %v581
    %701 = vmatpush.msra.mxu0 %v580
    %702 = vmatpush.msra.mxu0 %v579
    %703 = vmatpush.msra.mxu0 %v578
    %704 = vmatpush.msra.mxu0 %v577
    %705 = vmatpush.msra.mxu0 %v576
    %706 = vmatpush.msra.mxu0 %v575
    %707 = vmatpush.msra.mxu0 %v574
    %708 = vmatpush.msra.mxu0 %v573
    %709 = vmatpush.msra.mxu0 %v572
    %710 = vmatpush.msra.mxu0 %v571
    %711 = vmatpush.msra.mxu0 %v570
    %712 = vmatmul.f32.gmra.mxu0 %v626
    %v713 = vpop.f32.mrf.mxu0
    %v714 = vadd.f32 %v685, %v713
    %715 = vmatmul.f32.gmra.mxu0 %v628
    %v716 = vpop.f32.mrf.mxu0
    %v717 = vadd.f32 %v688, %v716
    %718 = vmatmul.f32.gmra.mxu0 %v631
    %v719 = vpop.f32.mrf.mxu0
    %v720 = vadd.f32 %v691, %v719
    %721 = vmatmul.f32.gmra.mxu0 %v633
    %v722 = vpop.f32.mrf.mxu0
    %v723 = vadd.f32 %v694, %v722
    %724 = vdwg.mxu0
    %v725 = vld [vmem:[%s6] sm:$0x1]
    %v727 = vperm.slane %v725, 0
    %v729 = vadd.f32 %v714, %v727
    %v730 = vadd.f32 %v717, %v727
    %v731 = vadd.f32 %v720, %v727
    %v732 = vadd.f32 %v723, %v727
    %vm733 = vcmp.gt.f32.partialorder %v729, 0.0
    %vm734 = vcmp.gt.f32.partialorder %v730, 0.0
    %vm735 = vcmp.gt.f32.partialorder %v731, 0.0
    %vm736 = vcmp.gt.f32.partialorder %v732, 0.0
    %v737 = vmin.f32 %v729, 0.0
    %v738 = vmin.f32 %v730, 0.0
    %v739 = vmin.f32 %v731, 0.0
    %v740 = vmin.f32 %v732, 0.0
    %v741 = vmul.f32 %v737, 1.442695
    %v742 = vpow.pop %v741
    %v743 = vmul.f32 %v738, 1.442695
    %v744 = vpow.pop %v743
    %v745 = vmul.f32 %v739, 1.442695
    %v746 = vpow.pop %v745
    %v747 = vmul.f32 %v740, 1.442695
    %v748 = vpow.pop %v747
    %v749 = vsub.f32 %v742, 1.0
    %v750 = vsub.f32 %v744, 1.0
    %v751 = vsub.f32 %v746, 1.0
    %v752 = vsub.f32 %v748, 1.0
    %v753 = vsel %vm733, %v729, %v749
    %v754 = vsel %vm734, %v730, %v750
    %v755 = vsel %vm735, %v731, %v751
    %v756 = vsel %vm736, %v732, %v752
    %v757 = vld [vmem:[#allocation11] sm:$0xff]
    %v758 = vld [vmem:[#allocation11 + $0x8] sm:$0xff]
    %v759 = vld [vmem:[#allocation11 + $0x10] sm:$0xff]
    %v760 = vld [vmem:[#allocation11 + $0x18] sm:$0xff]
    %v761 = vld [vmem:[#allocation11 + $0x20] sm:$0xff]
    %v762 = vld [vmem:[#allocation11 + $0x28] sm:$0xff]
    %v763 = vld [vmem:[#allocation11 + $0x30] sm:$0xff]
    %v764 = vld [vmem:[#allocation11 + $0x38] sm:$0xff]
    %v765 = vld [vmem:[#allocation11 + $0x40] sm:$0xff]
    %v766 = vld [vmem:[#allocation11 + $0x48] sm:$0xff]
    %v767 = vld [vmem:[#allocation11 + $0x50] sm:$0xff]
    %v768 = vld [vmem:[#allocation11 + $0x58] sm:$0xff]
    %v769 = vld [vmem:[#allocation11 + $0x60] sm:$0xff]
    %v770 = vld [vmem:[#allocation11 + $0x68] sm:$0xff]
    %v771 = vld [vmem:[#allocation11 + $0x70] sm:$0xff]
    %v772 = vld [vmem:[#allocation11 + $0x78] sm:$0xff]
    %773 = vmatpush.msra.mxu0 %v772
    %774 = vmatpush.msra.mxu0 %v771
    %775 = vmatpush.msra.mxu0 %v770
    %776 = vmatpush.msra.mxu0 %v769
    %777 = vmatpush.msra.mxu0 %v768
    %778 = vmatpush.msra.mxu0 %v767
    %779 = vmatpush.msra.mxu0 %v766
    %780 = vmatpush.msra.mxu0 %v765
    %781 = vmatpush.msra.mxu0 %v764
    %782 = vmatpush.msra.mxu0 %v763
    %783 = vmatpush.msra.mxu0 %v762
    %784 = vmatpush.msra.mxu0 %v761
    %785 = vmatpush.msra.mxu0 %v760
    %786 = vmatpush.msra.mxu0 %v759
    %787 = vmatpush.msra.mxu0 %v758
    %788 = vmatpush.msra.mxu0 %v757
    %789 = vmatmul.f32.gmra.mxu0 %v753
    %v790 = vpop.f32.mrf.mxu0
    %v791 = vadd.f32 0.0, %v790
    %792 = vmatmul.f32.gmra.mxu0 %v754
    %v793 = vpop.f32.mrf.mxu0
    %v794 = vadd.f32 0.0, %v793
    %795 = vmatmul.f32.gmra.mxu0 %v755
    %v796 = vpop.f32.mrf.mxu0
    %v797 = vadd.f32 0.0, %v796
    %798 = vmatmul.f32.gmra.mxu0 %v756
    %v799 = vpop.f32.mrf.mxu0
    %v800 = vadd.f32 0.0, %v799
    %801 = vdwg.mxu0
    %v802 = vld [vmem:[%s8] sm:$0x1]
    %v804 = vperm.slane %v802, 0
    %v806 = vadd.f32 %v791, %v804
    %v807 = vadd.f32 %v794, %v804
    %v808 = vadd.f32 %v797, %v804
    %v809 = vadd.f32 %v800, %v804
    %810 = vst [vmem:[#allocation13] sm:$0xff] %v806
    %811 = vst [vmem:[#allocation13 + $0x8] sm:$0xff] %v807
    %812 = vst [vmem:[#allocation13 + $0x10] sm:$0xff] %v808
    %813 = vst [vmem:[#allocation13 + $0x18] sm:$0xff] %v809
    // Predicated region
    $region62: #{tpu_custom_call.1} parent=1 // pred_check
      _
    $region63: #{tpu_custom_call.1} parent=1 // pred_check_branch
      %815 = sbr.rel (0) target = $region65
    $region64: #{tpu_custom_call.1} parent=1 // pred_region
      %817 = vsyncadd [#allocation4], 0
      %s818 = sshll.u32 [#allocation13], 4
      %s819 = int_to_ptr.vmem [resolvable:$true] %s818
      %s820 = sshll.u32 %s9, 4
      %s821 = int_to_ptr.hbm [resolvable:$true] %s820
      %826 = dma.vmem_to_hbm [thread:$0]  %s819, 512, %s821, [#allocation4], 128, 128, 8
    $region65: #{tpu_custom_call.1} parent=1 // pred_fallthru
      _
    // Predicated region
    $region66: #{tpu_custom_call.1} parent=1 // pred_check
      _
    $region67: #{tpu_custom_call.1} parent=1 // pred_check_branch
      %828 = sbr.rel (0) target = $region69
    $region68: #{tpu_custom_call.1} parent=1 // pred_region
      %830 = dma.done [#allocation4], 512
    $region69: #{tpu_custom_call.1} parent=1 // pred_fallthru
      _
    %831 = vsyncpa [#allocation3], 1
    %832 = vsyncpa [#allocation6], 1
    %833 = vsyncpa [#allocation9], 1
    %834 = vsyncpa [#allocation12], 1
    %835 = vsyncpa [#allocation4], 1

</llo_original>
